<compile_context>
chip_gen: v7x
topology: tpu7x:2x2x1
jax: 0.10.0
libtpu: 0.0.40
codegen_flags: <defaults>
</compile_context>

<pallas_src>
import math

import jax
import jax.numpy as jnp
from jax.experimental import pallas as pl
from jax.experimental.pallas import tpu as pltpu

SQRT2 = math.sqrt(2.0)
LRELU_ALPHA = 0.2


def _lrelu_gain(x):
    # sqrt(2) gain folded into both select arms (saves one VPU multiply / element).
    return jnp.where(x >= 0.0, SQRT2 * x, (LRELU_ALPHA * SQRT2) * x)


def _round_up(n, m):
    return ((n + m - 1) // m) * m


def _vmem_capacity_bytes():
    try:
        return int(pltpu.get_tpu_info().vmem_capacity_bytes)
    except Exception:
        return 128 << 20  # v5e/v6e-style default if the query is unavailable


def swapper_kernel(latent_ref, gsign_ref, gvec_ref,
                   w0_ref, b0_ref, w1_ref, b1_ref, out_ref):
    """8 chained FC layers + gvec shift + residual for one batch tile."""
    h = latent_ref[...]                                   # [tm, Z] f32

    # net0: 4 fully-connected lrelu layers (weights pre-scaled, [in, out], bf16)
    for i in range(4):
        h = _lrelu_gain(jnp.dot(h.astype(w0_ref.dtype), w0_ref[i],
                                preferred_element_type=jnp.float32) + b0_ref[i])

    # gvec interpolation: gsign = (src_gender*2 - 1) precomputed in wrapper,
    # gvec already scaled by magnitude; single VPU multiply-add.
    h = h + gsign_ref[...] * gvec_ref[...]                # [tm,1]*[1,Z] -> [tm,Z]

    # net1: 4 fully-connected lrelu layers
    for i in range(4):
        h = _lrelu_gain(jnp.dot(h.astype(w1_ref.dtype), w1_ref[i],
                                preferred_element_type=jnp.float32) + b1_ref[i])

    # residual: re-read the latent tile rather than holding it across 8 matmuls.
    out_ref[...] = latent_ref[...] + h


def latent_swapper_forward(latent, src_gender, params, magnitude=1.0,
                           batch_tile=None, single_buffer_resident=True):
    """Pallas wrapper.

    latent:     [B, Z] float32
    src_gender: [B, 1] float32 (0.0 or 1.0)
    params:     dict with 'w0','b0','w1','b1','gvec' (see init_params)
    """
    B, Z = latent.shape
    w0, b0, w1, b1 = params["w0"], params["b0"], params["w1"], params["b1"]

    # glue: fold magnitude into gvec ([1, Z], resident); precompute sign [B, 1].
    gvec_scaled = (params["gvec"].astype(jnp.float32) *
                   jnp.float32(magnitude))[None, :]
    gsign = src_gender.astype(jnp.float32) * 2.0 - 1.0

    # --- tiling ---------------------------------------------------------------
    vmem_cap_phys = _vmem_capacity_bytes()
    small_vmem = vmem_cap_phys <= (64 << 20)              # v7x-like
    if batch_tile is None:
        batch_tile = 256 if small_vmem else 512           # 128 MiB VMEM -> bigger tiles

    b_need = max(16, _round_up(B, 8))                     # min 16-row tile
    if b_need >= 256:
        # >= 2 (even) grid steps so ("parallel",) shards across v7x's 2 TCs;
        # costs ~0.35 us extra per step on single-TC chips, ~2x on v7x mid-batches.
        tm = min(batch_tile, max(128, _round_up((b_need + 1) // 2, 128)))
    else:
        tm = min(batch_tile, b_need)
    b_pad = _round_up(B, tm)

    if b_pad != B:
        latent_in = jnp.pad(latent, ((0, b_pad - B), (0, 0)))
        gsign = jnp.pad(gsign, ((0, b_pad - B), (0, 0)))
    else:
        latent_in = latent
    grid = (b_pad // tm,)

    # --- VMEM budget ------------------------------------------------------------
    # Residents are single-buffered (Buffered(1)); streamed tiles double-buffered;
    # explicit allowance for in-kernel h temporaries + Mosaic scratch headroom.
    w_bytes = w0.size * w0.dtype.itemsize + w1.size * w1.dtype.itemsize
    b_bytes = b0.size * 4 + b1.size * 4 + Z * 4
    resident_bytes = (1 if single_buffer_resident else 2) * (w_bytes + b_bytes)
    stream_bytes = 2 * (tm * Z * 4 + tm * 4) + 2 * (tm * Z * 4)
    temp_bytes = 3 * tm * Z * 4
    vmem_budget_cap = (56 << 20) if small_vmem else min(
        100 << 20, vmem_cap_phys - (8 << 20))
    vmem_limit = min(resident_bytes + stream_bytes + temp_bytes + (4 << 20),
                     vmem_budget_cap)

    cost = pl.CostEstimate(
        flops=2 * b_pad * Z * Z * 8,
        transcendentals=0,
        bytes_accessed=w_bytes + b_bytes + b_pad * 4 + 2 * b_pad * Z * 4,
    )

    def _resident_spec(block_shape):
        idx = lambda *_: (0,) * len(block_shape)
        if single_buffer_resident:
            return pl.BlockSpec(block_shape, idx, pipeline_mode=pl.Buffered(1))
        return pl.BlockSpec(block_shape, idx)

    out = pl.pallas_call(
        swapper_kernel,
        out_shape=jax.ShapeDtypeStruct((b_pad, Z), jnp.float32),
        grid=grid,
        in_specs=[
            pl.BlockSpec((tm, Z), lambda i: (i, 0)),   # latent tile (streamed)
            pl.BlockSpec((tm, 1), lambda i: (i, 0)),   # gsign tile (streamed)
            _resident_spec((1, Z)),                    # gvec*magnitude (resident)
            _resident_spec((4, Z, Z)),                 # net0 weights (resident)
            _resident_spec((4, 1, Z)),                 # net0 biases  (resident)
            _resident_spec((4, Z, Z)),                 # net1 weights (resident)
            _resident_spec((4, 1, Z)),                 # net1 biases  (resident)
        ],
        out_specs=pl.BlockSpec((tm, Z), lambda i: (i, 0)),
        compiler_params=pltpu.CompilerParams(
            dimension_semantics=("parallel",),
            vmem_limit_bytes=int(vmem_limit),
        ),
        cost_estimate=cost,
    )(latent_in, gsign, gvec_scaled, w0, b0, w1, b1)

    return out[:B]


def init_params(key, z_dims, weight_dtype=jnp.bfloat16):
    """Deterministic synthetic parameters mirroring the module's __init__.

    FullyConnectedLayer(z, z, activation='lrelu'):
       weight ~ randn([out, in]), bias = 0, weight_gain = 1/sqrt(in)
    Weights are pre-scaled by weight_gain, transposed to [in, out], and cast
    to bf16 (halves weight HBM traffic / hits the MXU's native bf16 path).
    """
    keys = jax.random.split(key, 9)
    wg = 1.0 / math.sqrt(z_dims)

    def make_stack(ks):
        ws = []
        for k in ks:
            w = jax.random.normal(k, (z_dims, z_dims), jnp.float32)  # [out, in]
            ws.append((w * wg).T)                                    # -> [in, out]
        return jnp.stack(ws, axis=0).astype(weight_dtype)            # [4, in, out]

    w0 = make_stack(keys[0:4])
    w1 = make_stack(keys[4:8])
    b0 = jnp.zeros((4, 1, z_dims), jnp.float32)   # bias_init = 0
    b1 = jnp.zeros((4, 1, z_dims), jnp.float32)
    gvec = jax.random.normal(keys[8], (z_dims,), jnp.float32)
    return {"w0": w0, "b0": b0, "w1": w1, "b1": b1, "gvec": gvec}


def reference_forward(latent, src_gender, params, magnitude=1.0):
    """Pure-JAX reference using the same bf16-weight / f32-accumulate path."""
    x = latent
    h = x
    wdt = params["w0"].dtype
    for i in range(4):
        h = _lrelu_gain(jnp.dot(h.astype(wdt), params["w0"][i],
                                preferred_element_type=jnp.float32)
                        + params["b0"][i])
    gsign = src_gender * 2.0 - 1.0
    h = h + gsign * (params["gvec"][None, :].astype(jnp.float32) * magnitude)
    for i in range(4):
        h = _lrelu_gain(jnp.dot(h.astype(wdt), params["w1"][i],
                                preferred_element_type=jnp.float32)
                        + params["b1"][i])
    return x + h


if __name__ == "__main__":
    # Demo sizes (module default z_dims=512; Z multiples of 256 map best onto the
    # 2x256^2 MXU of v6e/v7x — 128 is already full-width on v5e's 4x128^2 MXU).
    Z = 128
    B = 8
    MAGNITUDE = 1.0

    key = jax.random.PRNGKey(0)
    k_param, k_lat, k_gen = jax.random.split(key, 3)

    params = init_params(k_param, Z)
    latent = jax.random.normal(k_lat, (B, Z), jnp.float32)
    # src_gender in {0.0, 1.0}, shape [B, 1]
    src_gender = jax.random.bernoulli(k_gen, 0.5, (B, 1)).astype(jnp.float32)

    try:
        out = latent_swapper_forward(latent, src_gender, params,
                                     magnitude=MAGNITUDE)
    except Exception:
        # Fallback for environments where pl.Buffered(1) resident specs don't lower.
        out = latent_swapper_forward(latent, src_gender, params,
                                     magnitude=MAGNITUDE,
                                     single_buffer_resident=False)
    out = jax.block_until_ready(out)

    ref = reference_forward(latent, src_gender, params, magnitude=MAGNITUDE)
    assert out.shape == (B, Z)
    # bf16 weights => slightly looser tolerance than a pure-f32 check
    assert jnp.allclose(out, ref, rtol=1e-2, atol=1e-2), "mismatch vs reference"

    print("KERNEL_OK")
</pallas_src>

<mosaic_0001>
module attributes {stable_mosaic.version = 11 : i64} {
  func.func @swapper_kernel(%arg0: i32, %arg1: memref<16x128xf32, #tpu.memory_space<vmem>>, %arg2: memref<16x1xf32, #tpu.memory_space<vmem>>, %arg3: memref<1x128xf32, #tpu.memory_space<vmem>>, %arg4: memref<4x128x128xbf16, #tpu.memory_space<vmem>>, %arg5: memref<4x1x128xf32, #tpu.memory_space<vmem>>, %arg6: memref<4x128x128xbf16, #tpu.memory_space<vmem>>, %arg7: memref<4x1x128xf32, #tpu.memory_space<vmem>>, %arg8: memref<16x128xf32, #tpu.memory_space<vmem>>) attributes {dimension_semantics = [#tpu.dimension_semantics<parallel>], iteration_bounds = array<i64: 1>, scalar_prefetch = 0 : i64, scratch_operands = 0 : i64, tpu.core_type = #tpu.core_type<tc>, window_params = [{transform_indices = @transform_0, window_bounds = array<i64: 16, 128>}, {transform_indices = @transform_1, window_bounds = array<i64: 16, 1>}, {pipeline_mode = #tpu.pipeline_mode<synchronous>, transform_indices = @transform_2, window_bounds = array<i64: 1, 128>}, {pipeline_mode = #tpu.pipeline_mode<synchronous>, transform_indices = @transform_3, window_bounds = array<i64: 4, 128, 128>}, {pipeline_mode = #tpu.pipeline_mode<synchronous>, transform_indices = @transform_4, window_bounds = array<i64: 4, 1, 128>}, {pipeline_mode = #tpu.pipeline_mode<synchronous>, transform_indices = @transform_5, window_bounds = array<i64: 4, 128, 128>}, {pipeline_mode = #tpu.pipeline_mode<synchronous>, transform_indices = @transform_6, window_bounds = array<i64: 4, 1, 128>}, {transform_indices = @transform_7, window_bounds = array<i64: 16, 128>}]} {
    %c0 = arith.constant 0 : index
    %c0_0 = arith.constant 0 : index
    %0 = vector.load %arg1[%c0, %c0_0] : memref<16x128xf32, #tpu.memory_space<vmem>>, vector<16x128xf32>
    %1 = arith.truncf %0 : vector<16x128xf32> to vector<16x128xbf16>
    %c0_1 = arith.constant 0 : index
    %c0_2 = arith.constant 0 : index
    %c0_3 = arith.constant 0 : index
    %2 = vector.load %arg4[%c0_1, %c0_2, %c0_3] : memref<4x128x128xbf16, #tpu.memory_space<vmem>>, vector<1x128x128xbf16>
    %3 = vector.shape_cast %2 : vector<1x128x128xbf16> to vector<128x128xbf16>
    %cst = arith.constant dense<0.000000e+00> : vector<16x128xf32>
    %4 = tpu.matmul %1, %3, %cst {dimension_numbers = #tpu.dot_dimension_numbers<[1], [0], [0], [1], [0, 0, 1, 1], [], []>} : vector<16x128xbf16>, vector<128x128xbf16>, vector<16x128xf32> -> vector<16x128xf32>
    %c0_4 = arith.constant 0 : index
    %c0_5 = arith.constant 0 : index
    %c0_6 = arith.constant 0 : index
    %5 = vector.load %arg5[%c0_4, %c0_5, %c0_6] : memref<4x1x128xf32, #tpu.memory_space<vmem>>, vector<1x1x128xf32>
    %6 = vector.shape_cast %5 : vector<1x1x128xf32> to vector<1x128xf32>
    %7 = vector.broadcast %6 : vector<1x128xf32> to vector<16x128xf32>
    %8 = arith.addf %4, %7 : vector<16x128xf32>
    %cst_7 = arith.constant 0.000000e+00 : f32
    %9 = vector.broadcast %cst_7 : f32 to vector<16x128xf32>
    %10 = arith.cmpf oge, %8, %9 : vector<16x128xf32>
    %cst_8 = arith.constant 1.41421354 : f32
    %11 = vector.broadcast %cst_8 : f32 to vector<16x128xf32>
    %12 = arith.mulf %11, %8 : vector<16x128xf32>
    %cst_9 = arith.constant 0.282842726 : f32
    %13 = vector.broadcast %cst_9 : f32 to vector<16x128xf32>
    %14 = arith.mulf %13, %8 : vector<16x128xf32>
    %15 = arith.select %10, %12, %14 : vector<16x128xi1>, vector<16x128xf32>
    %16 = arith.truncf %15 : vector<16x128xf32> to vector<16x128xbf16>
    %c1 = arith.constant 1 : index
    %c0_10 = arith.constant 0 : index
    %c0_11 = arith.constant 0 : index
    %17 = vector.load %arg4[%c1, %c0_10, %c0_11] : memref<4x128x128xbf16, #tpu.memory_space<vmem>>, vector<1x128x128xbf16>
    %18 = vector.shape_cast %17 : vector<1x128x128xbf16> to vector<128x128xbf16>
    %cst_12 = arith.constant dense<0.000000e+00> : vector<16x128xf32>
    %19 = tpu.matmul %16, %18, %cst_12 {dimension_numbers = #tpu.dot_dimension_numbers<[1], [0], [0], [1], [0, 0, 1, 1], [], []>} : vector<16x128xbf16>, vector<128x128xbf16>, vector<16x128xf32> -> vector<16x128xf32>
    %c1_13 = arith.constant 1 : index
    %c0_14 = arith.constant 0 : index
    %c0_15 = arith.constant 0 : index
    %20 = vector.load %arg5[%c1_13, %c0_14, %c0_15] : memref<4x1x128xf32, #tpu.memory_space<vmem>>, vector<1x1x128xf32>
    %21 = vector.shape_cast %20 : vector<1x1x128xf32> to vector<1x128xf32>
    %22 = vector.broadcast %21 : vector<1x128xf32> to vector<16x128xf32>
    %23 = arith.addf %19, %22 : vector<16x128xf32>
    %cst_16 = arith.constant 0.000000e+00 : f32
    %24 = vector.broadcast %cst_16 : f32 to vector<16x128xf32>
    %25 = arith.cmpf oge, %23, %24 : vector<16x128xf32>
    %cst_17 = arith.constant 1.41421354 : f32
    %26 = vector.broadcast %cst_17 : f32 to vector<16x128xf32>
    %27 = arith.mulf %26, %23 : vector<16x128xf32>
    %cst_18 = arith.constant 0.282842726 : f32
    %28 = vector.broadcast %cst_18 : f32 to vector<16x128xf32>
    %29 = arith.mulf %28, %23 : vector<16x128xf32>
    %30 = arith.select %25, %27, %29 : vector<16x128xi1>, vector<16x128xf32>
    %31 = arith.truncf %30 : vector<16x128xf32> to vector<16x128xbf16>
    %c2 = arith.constant 2 : index
    %c0_19 = arith.constant 0 : index
    %c0_20 = arith.constant 0 : index
    %32 = vector.load %arg4[%c2, %c0_19, %c0_20] : memref<4x128x128xbf16, #tpu.memory_space<vmem>>, vector<1x128x128xbf16>
    %33 = vector.shape_cast %32 : vector<1x128x128xbf16> to vector<128x128xbf16>
    %cst_21 = arith.constant dense<0.000000e+00> : vector<16x128xf32>
    %34 = tpu.matmul %31, %33, %cst_21 {dimension_numbers = #tpu.dot_dimension_numbers<[1], [0], [0], [1], [0, 0, 1, 1], [], []>} : vector<16x128xbf16>, vector<128x128xbf16>, vector<16x128xf32> -> vector<16x128xf32>
    %c2_22 = arith.constant 2 : index
    %c0_23 = arith.constant 0 : index
    %c0_24 = arith.constant 0 : index
    %35 = vector.load %arg5[%c2_22, %c0_23, %c0_24] : memref<4x1x128xf32, #tpu.memory_space<vmem>>, vector<1x1x128xf32>
    %36 = vector.shape_cast %35 : vector<1x1x128xf32> to vector<1x128xf32>
    %37 = vector.broadcast %36 : vector<1x128xf32> to vector<16x128xf32>
    %38 = arith.addf %34, %37 : vector<16x128xf32>
    %cst_25 = arith.constant 0.000000e+00 : f32
    %39 = vector.broadcast %cst_25 : f32 to vector<16x128xf32>
    %40 = arith.cmpf oge, %38, %39 : vector<16x128xf32>
    %cst_26 = arith.constant 1.41421354 : f32
    %41 = vector.broadcast %cst_26 : f32 to vector<16x128xf32>
    %42 = arith.mulf %41, %38 : vector<16x128xf32>
    %cst_27 = arith.constant 0.282842726 : f32
    %43 = vector.broadcast %cst_27 : f32 to vector<16x128xf32>
    %44 = arith.mulf %43, %38 : vector<16x128xf32>
    %45 = arith.select %40, %42, %44 : vector<16x128xi1>, vector<16x128xf32>
    %46 = arith.truncf %45 : vector<16x128xf32> to vector<16x128xbf16>
    %c3 = arith.constant 3 : index
    %c0_28 = arith.constant 0 : index
    %c0_29 = arith.constant 0 : index
    %47 = vector.load %arg4[%c3, %c0_28, %c0_29] : memref<4x128x128xbf16, #tpu.memory_space<vmem>>, vector<1x128x128xbf16>
    %48 = vector.shape_cast %47 : vector<1x128x128xbf16> to vector<128x128xbf16>
    %cst_30 = arith.constant dense<0.000000e+00> : vector<16x128xf32>
    %49 = tpu.matmul %46, %48, %cst_30 {dimension_numbers = #tpu.dot_dimension_numbers<[1], [0], [0], [1], [0, 0, 1, 1], [], []>} : vector<16x128xbf16>, vector<128x128xbf16>, vector<16x128xf32> -> vector<16x128xf32>
    %c3_31 = arith.constant 3 : index
    %c0_32 = arith.constant 0 : index
    %c0_33 = arith.constant 0 : index
    %50 = vector.load %arg5[%c3_31, %c0_32, %c0_33] : memref<4x1x128xf32, #tpu.memory_space<vmem>>, vector<1x1x128xf32>
    %51 = vector.shape_cast %50 : vector<1x1x128xf32> to vector<1x128xf32>
    %52 = vector.broadcast %51 : vector<1x128xf32> to vector<16x128xf32>
    %53 = arith.addf %49, %52 : vector<16x128xf32>
    %cst_34 = arith.constant 0.000000e+00 : f32
    %54 = vector.broadcast %cst_34 : f32 to vector<16x128xf32>
    %55 = arith.cmpf oge, %53, %54 : vector<16x128xf32>
    %cst_35 = arith.constant 1.41421354 : f32
    %56 = vector.broadcast %cst_35 : f32 to vector<16x128xf32>
    %57 = arith.mulf %56, %53 : vector<16x128xf32>
    %cst_36 = arith.constant 0.282842726 : f32
    %58 = vector.broadcast %cst_36 : f32 to vector<16x128xf32>
    %59 = arith.mulf %58, %53 : vector<16x128xf32>
    %60 = arith.select %55, %57, %59 : vector<16x128xi1>, vector<16x128xf32>
    %c0_37 = arith.constant 0 : index
    %c0_38 = arith.constant 0 : index
    %61 = vector.load %arg2[%c0_37, %c0_38] : memref<16x1xf32, #tpu.memory_space<vmem>>, vector<16x1xf32>
    %c0_39 = arith.constant 0 : index
    %c0_40 = arith.constant 0 : index
    %62 = vector.load %arg3[%c0_39, %c0_40] : memref<1x128xf32, #tpu.memory_space<vmem>>, vector<1x128xf32>
    %63 = vector.broadcast %61 : vector<16x1xf32> to vector<16x128xf32>
    %64 = vector.broadcast %62 : vector<1x128xf32> to vector<16x128xf32>
    %65 = arith.mulf %63, %64 : vector<16x128xf32>
    %66 = arith.addf %60, %65 : vector<16x128xf32>
    %67 = arith.truncf %66 : vector<16x128xf32> to vector<16x128xbf16>
    %c0_41 = arith.constant 0 : index
    %c0_42 = arith.constant 0 : index
    %c0_43 = arith.constant 0 : index
    %68 = vector.load %arg6[%c0_41, %c0_42, %c0_43] : memref<4x128x128xbf16, #tpu.memory_space<vmem>>, vector<1x128x128xbf16>
    %69 = vector.shape_cast %68 : vector<1x128x128xbf16> to vector<128x128xbf16>
    %cst_44 = arith.constant dense<0.000000e+00> : vector<16x128xf32>
    %70 = tpu.matmul %67, %69, %cst_44 {dimension_numbers = #tpu.dot_dimension_numbers<[1], [0], [0], [1], [0, 0, 1, 1], [], []>} : vector<16x128xbf16>, vector<128x128xbf16>, vector<16x128xf32> -> vector<16x128xf32>
    %c0_45 = arith.constant 0 : index
    %c0_46 = arith.constant 0 : index
    %c0_47 = arith.constant 0 : index
    %71 = vector.load %arg7[%c0_45, %c0_46, %c0_47] : memref<4x1x128xf32, #tpu.memory_space<vmem>>, vector<1x1x128xf32>
    %72 = vector.shape_cast %71 : vector<1x1x128xf32> to vector<1x128xf32>
    %73 = vector.broadcast %72 : vector<1x128xf32> to vector<16x128xf32>
    %74 = arith.addf %70, %73 : vector<16x128xf32>
    %cst_48 = arith.constant 0.000000e+00 : f32
    %75 = vector.broadcast %cst_48 : f32 to vector<16x128xf32>
    %76 = arith.cmpf oge, %74, %75 : vector<16x128xf32>
    %cst_49 = arith.constant 1.41421354 : f32
    %77 = vector.broadcast %cst_49 : f32 to vector<16x128xf32>
    %78 = arith.mulf %77, %74 : vector<16x128xf32>
    %cst_50 = arith.constant 0.282842726 : f32
    %79 = vector.broadcast %cst_50 : f32 to vector<16x128xf32>
    %80 = arith.mulf %79, %74 : vector<16x128xf32>
    %81 = arith.select %76, %78, %80 : vector<16x128xi1>, vector<16x128xf32>
    %82 = arith.truncf %81 : vector<16x128xf32> to vector<16x128xbf16>
    %c1_51 = arith.constant 1 : index
    %c0_52 = arith.constant 0 : index
    %c0_53 = arith.constant 0 : index
    %83 = vector.load %arg6[%c1_51, %c0_52, %c0_53] : memref<4x128x128xbf16, #tpu.memory_space<vmem>>, vector<1x128x128xbf16>
    %84 = vector.shape_cast %83 : vector<1x128x128xbf16> to vector<128x128xbf16>
    %cst_54 = arith.constant dense<0.000000e+00> : vector<16x128xf32>
    %85 = tpu.matmul %82, %84, %cst_54 {dimension_numbers = #tpu.dot_dimension_numbers<[1], [0], [0], [1], [0, 0, 1, 1], [], []>} : vector<16x128xbf16>, vector<128x128xbf16>, vector<16x128xf32> -> vector<16x128xf32>
    %c1_55 = arith.constant 1 : index
    %c0_56 = arith.constant 0 : index
    %c0_57 = arith.constant 0 : index
    %86 = vector.load %arg7[%c1_55, %c0_56, %c0_57] : memref<4x1x128xf32, #tpu.memory_space<vmem>>, vector<1x1x128xf32>
    %87 = vector.shape_cast %86 : vector<1x1x128xf32> to vector<1x128xf32>
    %88 = vector.broadcast %87 : vector<1x128xf32> to vector<16x128xf32>
    %89 = arith.addf %85, %88 : vector<16x128xf32>
    %cst_58 = arith.constant 0.000000e+00 : f32
    %90 = vector.broadcast %cst_58 : f32 to vector<16x128xf32>
    %91 = arith.cmpf oge, %89, %90 : vector<16x128xf32>
    %cst_59 = arith.constant 1.41421354 : f32
    %92 = vector.broadcast %cst_59 : f32 to vector<16x128xf32>
    %93 = arith.mulf %92, %89 : vector<16x128xf32>
    %cst_60 = arith.constant 0.282842726 : f32
    %94 = vector.broadcast %cst_60 : f32 to vector<16x128xf32>
    %95 = arith.mulf %94, %89 : vector<16x128xf32>
    %96 = arith.select %91, %93, %95 : vector<16x128xi1>, vector<16x128xf32>
    %97 = arith.truncf %96 : vector<16x128xf32> to vector<16x128xbf16>
    %c2_61 = arith.constant 2 : index
    %c0_62 = arith.constant 0 : index
    %c0_63 = arith.constant 0 : index
    %98 = vector.load %arg6[%c2_61, %c0_62, %c0_63] : memref<4x128x128xbf16, #tpu.memory_space<vmem>>, vector<1x128x128xbf16>
    %99 = vector.shape_cast %98 : vector<1x128x128xbf16> to vector<128x128xbf16>
    %cst_64 = arith.constant dense<0.000000e+00> : vector<16x128xf32>
    %100 = tpu.matmul %97, %99, %cst_64 {dimension_numbers = #tpu.dot_dimension_numbers<[1], [0], [0], [1], [0, 0, 1, 1], [], []>} : vector<16x128xbf16>, vector<128x128xbf16>, vector<16x128xf32> -> vector<16x128xf32>
    %c2_65 = arith.constant 2 : index
    %c0_66 = arith.constant 0 : index
    %c0_67 = arith.constant 0 : index
    %101 = vector.load %arg7[%c2_65, %c0_66, %c0_67] : memref<4x1x128xf32, #tpu.memory_space<vmem>>, vector<1x1x128xf32>
    %102 = vector.shape_cast %101 : vector<1x1x128xf32> to vector<1x128xf32>
    %103 = vector.broadcast %102 : vector<1x128xf32> to vector<16x128xf32>
    %104 = arith.addf %100, %103 : vector<16x128xf32>
    %cst_68 = arith.constant 0.000000e+00 : f32
    %105 = vector.broadcast %cst_68 : f32 to vector<16x128xf32>
    %106 = arith.cmpf oge, %104, %105 : vector<16x128xf32>
    %cst_69 = arith.constant 1.41421354 : f32
    %107 = vector.broadcast %cst_69 : f32 to vector<16x128xf32>
    %108 = arith.mulf %107, %104 : vector<16x128xf32>
    %cst_70 = arith.constant 0.282842726 : f32
    %109 = vector.broadcast %cst_70 : f32 to vector<16x128xf32>
    %110 = arith.mulf %109, %104 : vector<16x128xf32>
    %111 = arith.select %106, %108, %110 : vector<16x128xi1>, vector<16x128xf32>
    %112 = arith.truncf %111 : vector<16x128xf32> to vector<16x128xbf16>
    %c3_71 = arith.constant 3 : index
    %c0_72 = arith.constant 0 : index
    %c0_73 = arith.constant 0 : index
    %113 = vector.load %arg6[%c3_71, %c0_72, %c0_73] : memref<4x128x128xbf16, #tpu.memory_space<vmem>>, vector<1x128x128xbf16>
    %114 = vector.shape_cast %113 : vector<1x128x128xbf16> to vector<128x128xbf16>
    %cst_74 = arith.constant dense<0.000000e+00> : vector<16x128xf32>
    %115 = tpu.matmul %112, %114, %cst_74 {dimension_numbers = #tpu.dot_dimension_numbers<[1], [0], [0], [1], [0, 0, 1, 1], [], []>} : vector<16x128xbf16>, vector<128x128xbf16>, vector<16x128xf32> -> vector<16x128xf32>
    %c3_75 = arith.constant 3 : index
    %c0_76 = arith.constant 0 : index
    %c0_77 = arith.constant 0 : index
    %116 = vector.load %arg7[%c3_75, %c0_76, %c0_77] : memref<4x1x128xf32, #tpu.memory_space<vmem>>, vector<1x1x128xf32>
    %117 = vector.shape_cast %116 : vector<1x1x128xf32> to vector<1x128xf32>
    %118 = vector.broadcast %117 : vector<1x128xf32> to vector<16x128xf32>
    %119 = arith.addf %115, %118 : vector<16x128xf32>
    %cst_78 = arith.constant 0.000000e+00 : f32
    %120 = vector.broadcast %cst_78 : f32 to vector<16x128xf32>
    %121 = arith.cmpf oge, %119, %120 : vector<16x128xf32>
    %cst_79 = arith.constant 1.41421354 : f32
    %122 = vector.broadcast %cst_79 : f32 to vector<16x128xf32>
    %123 = arith.mulf %122, %119 : vector<16x128xf32>
    %cst_80 = arith.constant 0.282842726 : f32
    %124 = vector.broadcast %cst_80 : f32 to vector<16x128xf32>
    %125 = arith.mulf %124, %119 : vector<16x128xf32>
    %126 = arith.select %121, %123, %125 : vector<16x128xi1>, vector<16x128xf32>
    %c0_81 = arith.constant 0 : index
    %c0_82 = arith.constant 0 : index
    %127 = vector.load %arg1[%c0_81, %c0_82] : memref<16x128xf32, #tpu.memory_space<vmem>>, vector<16x128xf32>
    %128 = arith.addf %127, %126 : vector<16x128xf32>
    %c0_83 = arith.constant 0 : index
    %c0_84 = arith.constant 0 : index
    %129 = vector.load %arg8[%c0_83, %c0_84] : memref<16x128xf32, #tpu.memory_space<vmem>>, vector<16x128xf32>
    tpu.vector_store %arg8[%c0_83, %c0_84], %128 {strides = array<i32>} : memref<16x128xf32, #tpu.memory_space<vmem>>, vector<16x128xf32>,
    return
  }
  func.func @transform_0(%arg0: i32) -> (i32, i32) {
    %c0_i32 = arith.constant 0 : i32
    %c0_i32_0 = arith.constant 0 : i32
    return %arg0, %c0_i32 : i32, i32
  }
  func.func @transform_1(%arg0: i32) -> (i32, i32) {
    %c0_i32 = arith.constant 0 : i32
    %c0_i32_0 = arith.constant 0 : i32
    return %arg0, %c0_i32 : i32, i32
  }
  func.func @transform_2(%arg0: i32) -> (i32, i32) {
    %c0_i32 = arith.constant 0 : i32
    %c0_i32_0 = arith.constant 0 : i32
    %c0_i32_1 = arith.constant 0 : i32
    return %c0_i32, %c0_i32_0 : i32, i32
  }
  func.func @transform_3(%arg0: i32) -> (i32, i32, i32) {
    %c0_i32 = arith.constant 0 : i32
    %c0_i32_0 = arith.constant 0 : i32
    %c0_i32_1 = arith.constant 0 : i32
    %c0_i32_2 = arith.constant 0 : i32
    return %c0_i32, %c0_i32_0, %c0_i32_1 : i32, i32, i32
  }
  func.func @transform_4(%arg0: i32) -> (i32, i32, i32) {
    %c0_i32 = arith.constant 0 : i32
    %c0_i32_0 = arith.constant 0 : i32
    %c0_i32_1 = arith.constant 0 : i32
    %c0_i32_2 = arith.constant 0 : i32
    return %c0_i32, %c0_i32_0, %c0_i32_1 : i32, i32, i32
  }
  func.func @transform_5(%arg0: i32) -> (i32, i32, i32) {
    %c0_i32 = arith.constant 0 : i32
    %c0_i32_0 = arith.constant 0 : i32
    %c0_i32_1 = arith.constant 0 : i32
    %c0_i32_2 = arith.constant 0 : i32
    return %c0_i32, %c0_i32_0, %c0_i32_1 : i32, i32, i32
  }
  func.func @transform_6(%arg0: i32) -> (i32, i32, i32) {
    %c0_i32 = arith.constant 0 : i32
    %c0_i32_0 = arith.constant 0 : i32
    %c0_i32_1 = arith.constant 0 : i32
    %c0_i32_2 = arith.constant 0 : i32
    return %c0_i32, %c0_i32_0, %c0_i32_1 : i32, i32, i32
  }
  func.func @transform_7(%arg0: i32) -> (i32, i32) {
    %c0_i32 = arith.constant 0 : i32
    %c0_i32_0 = arith.constant 0 : i32
    return %arg0, %c0_i32 : i32, i32
  }
}

module attributes {stable_mosaic.version = 11 : i64} {
  func.func @swapper_kernel(%arg0: i32, %arg1: memref<16x128xf32, #tpu.memory_space<vmem>>, %arg2: memref<16x1xf32, #tpu.memory_space<vmem>>, %arg3: memref<1x128xf32, #tpu.memory_space<vmem>>, %arg4: memref<4x128x128xbf16, #tpu.memory_space<vmem>>, %arg5: memref<4x1x128xf32, #tpu.memory_space<vmem>>, %arg6: memref<4x128x128xbf16, #tpu.memory_space<vmem>>, %arg7: memref<4x1x128xf32, #tpu.memory_space<vmem>>, %arg8: memref<16x128xf32, #tpu.memory_space<vmem>>) attributes {dimension_semantics = [#tpu.dimension_semantics<parallel>], iteration_bounds = array<i64: 1>, scalar_prefetch = 0 : i64, scratch_operands = 0 : i64, tpu.core_type = #tpu.core_type<tc>, window_params = [{transform_indices = @transform_0, window_bounds = array<i64: 16, 128>}, {transform_indices = @transform_1, window_bounds = array<i64: 16, 1>}, {pipeline_mode = #tpu.pipeline_mode<synchronous>, transform_indices = @transform_2, window_bounds = array<i64: 1, 128>}, {pipeline_mode = #tpu.pipeline_mode<synchronous>, transform_indices = @transform_3, window_bounds = array<i64: 4, 128, 128>}, {pipeline_mode = #tpu.pipeline_mode<synchronous>, transform_indices = @transform_4, window_bounds = array<i64: 4, 1, 128>}, {pipeline_mode = #tpu.pipeline_mode<synchronous>, transform_indices = @transform_5, window_bounds = array<i64: 4, 128, 128>}, {pipeline_mode = #tpu.pipeline_mode<synchronous>, transform_indices = @transform_6, window_bounds = array<i64: 4, 1, 128>}, {transform_indices = @transform_7, window_bounds = array<i64: 16, 128>}]} {
    %c0 = arith.constant 0 : index
    %c0_0 = arith.constant 0 : index
    %0 = vector.load %arg1[%c0, %c0_0] : memref<16x128xf32, #tpu.memory_space<vmem>>, vector<16x128xf32>
    %1 = arith.truncf %0 : vector<16x128xf32> to vector<16x128xbf16>
    %c0_1 = arith.constant 0 : index
    %c0_2 = arith.constant 0 : index
    %c0_3 = arith.constant 0 : index
    %2 = vector.load %arg4[%c0_1, %c0_2, %c0_3] : memref<4x128x128xbf16, #tpu.memory_space<vmem>>, vector<1x128x128xbf16>
    %3 = vector.shape_cast %2 : vector<1x128x128xbf16> to vector<128x128xbf16>
    %cst = arith.constant dense<0.000000e+00> : vector<16x128xf32>
    %4 = tpu.matmul %1, %3, %cst {dimension_numbers = #tpu.dot_dimension_numbers<[1], [0], [0], [1], [0, 0, 1, 1], [], []>} : vector<16x128xbf16>, vector<128x128xbf16>, vector<16x128xf32> -> vector<16x128xf32>
    %c0_4 = arith.constant 0 : index
    %c0_5 = arith.constant 0 : index
    %c0_6 = arith.constant 0 : index
    %5 = vector.load %arg5[%c0_4, %c0_5, %c0_6] : memref<4x1x128xf32, #tpu.memory_space<vmem>>, vector<1x1x128xf32>
    %6 = vector.shape_cast %5 : vector<1x1x128xf32> to vector<1x128xf32>
    %7 = vector.broadcast %6 : vector<1x128xf32> to vector<16x128xf32>
    %8 = arith.addf %4, %7 : vector<16x128xf32>
    %cst_7 = arith.constant 0.000000e+00 : f32
    %9 = vector.broadcast %cst_7 : f32 to vector<16x128xf32>
    %10 = arith.cmpf oge, %8, %9 : vector<16x128xf32>
    %cst_8 = arith.constant 1.41421354 : f32
    %11 = vector.broadcast %cst_8 : f32 to vector<16x128xf32>
    %12 = arith.mulf %11, %8 : vector<16x128xf32>
    %cst_9 = arith.constant 0.282842726 : f32
    %13 = vector.broadcast %cst_9 : f32 to vector<16x128xf32>
    %14 = arith.mulf %13, %8 : vector<16x128xf32>
    %15 = arith.select %10, %12, %14 : vector<16x128xi1>, vector<16x128xf32>
    %16 = arith.truncf %15 : vector<16x128xf32> to vector<16x128xbf16>
    %c1 = arith.constant 1 : index
    %c0_10 = arith.constant 0 : index
    %c0_11 = arith.constant 0 : index
    %17 = vector.load %arg4[%c1, %c0_10, %c0_11] : memref<4x128x128xbf16, #tpu.memory_space<vmem>>, vector<1x128x128xbf16>
    %18 = vector.shape_cast %17 : vector<1x128x128xbf16> to vector<128x128xbf16>
    %cst_12 = arith.constant dense<0.000000e+00> : vector<16x128xf32>
    %19 = tpu.matmul %16, %18, %cst_12 {dimension_numbers = #tpu.dot_dimension_numbers<[1], [0], [0], [1], [0, 0, 1, 1], [], []>} : vector<16x128xbf16>, vector<128x128xbf16>, vector<16x128xf32> -> vector<16x128xf32>
    %c1_13 = arith.constant 1 : index
    %c0_14 = arith.constant 0 : index
    %c0_15 = arith.constant 0 : index
    %20 = vector.load %arg5[%c1_13, %c0_14, %c0_15] : memref<4x1x128xf32, #tpu.memory_space<vmem>>, vector<1x1x128xf32>
    %21 = vector.shape_cast %20 : vector<1x1x128xf32> to vector<1x128xf32>
    %22 = vector.broadcast %21 : vector<1x128xf32> to vector<16x128xf32>
    %23 = arith.addf %19, %22 : vector<16x128xf32>
    %cst_16 = arith.constant 0.000000e+00 : f32
    %24 = vector.broadcast %cst_16 : f32 to vector<16x128xf32>
    %25 = arith.cmpf oge, %23, %24 : vector<16x128xf32>
    %cst_17 = arith.constant 1.41421354 : f32
    %26 = vector.broadcast %cst_17 : f32 to vector<16x128xf32>
    %27 = arith.mulf %26, %23 : vector<16x128xf32>
    %cst_18 = arith.constant 0.282842726 : f32
    %28 = vector.broadcast %cst_18 : f32 to vector<16x128xf32>
    %29 = arith.mulf %28, %23 : vector<16x128xf32>
    %30 = arith.select %25, %27, %29 : vector<16x128xi1>, vector<16x128xf32>
    %31 = arith.truncf %30 : vector<16x128xf32> to vector<16x128xbf16>
    %c2 = arith.constant 2 : index
    %c0_19 = arith.constant 0 : index
    %c0_20 = arith.constant 0 : index
    %32 = vector.load %arg4[%c2, %c0_19, %c0_20] : memref<4x128x128xbf16, #tpu.memory_space<vmem>>, vector<1x128x128xbf16>
    %33 = vector.shape_cast %32 : vector<1x128x128xbf16> to vector<128x128xbf16>
    %cst_21 = arith.constant dense<0.000000e+00> : vector<16x128xf32>
    %34 = tpu.matmul %31, %33, %cst_21 {dimension_numbers = #tpu.dot_dimension_numbers<[1], [0], [0], [1], [0, 0, 1, 1], [], []>} : vector<16x128xbf16>, vector<128x128xbf16>, vector<16x128xf32> -> vector<16x128xf32>
    %c2_22 = arith.constant 2 : index
    %c0_23 = arith.constant 0 : index
    %c0_24 = arith.constant 0 : index
    %35 = vector.load %arg5[%c2_22, %c0_23, %c0_24] : memref<4x1x128xf32, #tpu.memory_space<vmem>>, vector<1x1x128xf32>
    %36 = vector.shape_cast %35 : vector<1x1x128xf32> to vector<1x128xf32>
    %37 = vector.broadcast %36 : vector<1x128xf32> to vector<16x128xf32>
    %38 = arith.addf %34, %37 : vector<16x128xf32>
    %cst_25 = arith.constant 0.000000e+00 : f32
    %39 = vector.broadcast %cst_25 : f32 to vector<16x128xf32>
    %40 = arith.cmpf oge, %38, %39 : vector<16x128xf32>
    %cst_26 = arith.constant 1.41421354 : f32
    %41 = vector.broadcast %cst_26 : f32 to vector<16x128xf32>
    %42 = arith.mulf %41, %38 : vector<16x128xf32>
    %cst_27 = arith.constant 0.282842726 : f32
    %43 = vector.broadcast %cst_27 : f32 to vector<16x128xf32>
    %44 = arith.mulf %43, %38 : vector<16x128xf32>
    %45 = arith.select %40, %42, %44 : vector<16x128xi1>, vector<16x128xf32>
    %46 = arith.truncf %45 : vector<16x128xf32> to vector<16x128xbf16>
    %c3 = arith.constant 3 : index
    %c0_28 = arith.constant 0 : index
    %c0_29 = arith.constant 0 : index
    %47 = vector.load %arg4[%c3, %c0_28, %c0_29] : memref<4x128x128xbf16, #tpu.memory_space<vmem>>, vector<1x128x128xbf16>
    %48 = vector.shape_cast %47 : vector<1x128x128xbf16> to vector<128x128xbf16>
    %cst_30 = arith.constant dense<0.000000e+00> : vector<16x128xf32>
    %49 = tpu.matmul %46, %48, %cst_30 {dimension_numbers = #tpu.dot_dimension_numbers<[1], [0], [0], [1], [0, 0, 1, 1], [], []>} : vector<16x128xbf16>, vector<128x128xbf16>, vector<16x128xf32> -> vector<16x128xf32>
    %c3_31 = arith.constant 3 : index
    %c0_32 = arith.constant 0 : index
    %c0_33 = arith.constant 0 : index
    %50 = vector.load %arg5[%c3_31, %c0_32, %c0_33] : memref<4x1x128xf32, #tpu.memory_space<vmem>>, vector<1x1x128xf32>
    %51 = vector.shape_cast %50 : vector<1x1x128xf32> to vector<1x128xf32>
    %52 = vector.broadcast %51 : vector<1x128xf32> to vector<16x128xf32>
    %53 = arith.addf %49, %52 : vector<16x128xf32>
    %cst_34 = arith.constant 0.000000e+00 : f32
    %54 = vector.broadcast %cst_34 : f32 to vector<16x128xf32>
    %55 = arith.cmpf oge, %53, %54 : vector<16x128xf32>
    %cst_35 = arith.constant 1.41421354 : f32
    %56 = vector.broadcast %cst_35 : f32 to vector<16x128xf32>
    %57 = arith.mulf %56, %53 : vector<16x128xf32>
    %cst_36 = arith.constant 0.282842726 : f32
    %58 = vector.broadcast %cst_36 : f32 to vector<16x128xf32>
    %59 = arith.mulf %58, %53 : vector<16x128xf32>
    %60 = arith.select %55, %57, %59 : vector<16x128xi1>, vector<16x128xf32>
    %c0_37 = arith.constant 0 : index
    %c0_38 = arith.constant 0 : index
    %61 = vector.load %arg2[%c0_37, %c0_38] : memref<16x1xf32, #tpu.memory_space<vmem>>, vector<16x1xf32>
    %c0_39 = arith.constant 0 : index
    %c0_40 = arith.constant 0 : index
    %62 = vector.load %arg3[%c0_39, %c0_40] : memref<1x128xf32, #tpu.memory_space<vmem>>, vector<1x128xf32>
    %63 = vector.broadcast %61 : vector<16x1xf32> to vector<16x128xf32>
    %64 = vector.broadcast %62 : vector<1x128xf32> to vector<16x128xf32>
    %65 = arith.mulf %63, %64 : vector<16x128xf32>
    %66 = arith.addf %60, %65 : vector<16x128xf32>
    %67 = arith.truncf %66 : vector<16x128xf32> to vector<16x128xbf16>
    %c0_41 = arith.constant 0 : index
    %c0_42 = arith.constant 0 : index
    %c0_43 = arith.constant 0 : index
    %68 = vector.load %arg6[%c0_41, %c0_42, %c0_43] : memref<4x128x128xbf16, #tpu.memory_space<vmem>>, vector<1x128x128xbf16>
    %69 = vector.shape_cast %68 : vector<1x128x128xbf16> to vector<128x128xbf16>
    %cst_44 = arith.constant dense<0.000000e+00> : vector<16x128xf32>
    %70 = tpu.matmul %67, %69, %cst_44 {dimension_numbers = #tpu.dot_dimension_numbers<[1], [0], [0], [1], [0, 0, 1, 1], [], []>} : vector<16x128xbf16>, vector<128x128xbf16>, vector<16x128xf32> -> vector<16x128xf32>
    %c0_45 = arith.constant 0 : index
    %c0_46 = arith.constant 0 : index
    %c0_47 = arith.constant 0 : index
    %71 = vector.load %arg7[%c0_45, %c0_46, %c0_47] : memref<4x1x128xf32, #tpu.memory_space<vmem>>, vector<1x1x128xf32>
    %72 = vector.shape_cast %71 : vector<1x1x128xf32> to vector<1x128xf32>
    %73 = vector.broadcast %72 : vector<1x128xf32> to vector<16x128xf32>
    %74 = arith.addf %70, %73 : vector<16x128xf32>
    %cst_48 = arith.constant 0.000000e+00 : f32
    %75 = vector.broadcast %cst_48 : f32 to vector<16x128xf32>
    %76 = arith.cmpf oge, %74, %75 : vector<16x128xf32>
    %cst_49 = arith.constant 1.41421354 : f32
    %77 = vector.broadcast %cst_49 : f32 to vector<16x128xf32>
    %78 = arith.mulf %77, %74 : vector<16x128xf32>
    %cst_50 = arith.constant 0.282842726 : f32
    %79 = vector.broadcast %cst_50 : f32 to vector<16x128xf32>
    %80 = arith.mulf %79, %74 : vector<16x128xf32>
    %81 = arith.select %76, %78, %80 : vector<16x128xi1>, vector<16x128xf32>
    %82 = arith.truncf %81 : vector<16x128xf32> to vector<16x128xbf16>
    %c1_51 = arith.constant 1 : index
    %c0_52 = arith.constant 0 : index
    %c0_53 = arith.constant 0 : index
    %83 = vector.load %arg6[%c1_51, %c0_52, %c0_53] : memref<4x128x128xbf16, #tpu.memory_space<vmem>>, vector<1x128x128xbf16>
    %84 = vector.shape_cast %83 : vector<1x128x128xbf16> to vector<128x128xbf16>
    %cst_54 = arith.constant dense<0.000000e+00> : vector<16x128xf32>
    %85 = tpu.matmul %82, %84, %cst_54 {dimension_numbers = #tpu.dot_dimension_numbers<[1], [0], [0], [1], [0, 0, 1, 1], [], []>} : vector<16x128xbf16>, vector<128x128xbf16>, vector<16x128xf32> -> vector<16x128xf32>
    %c1_55 = arith.constant 1 : index
    %c0_56 = arith.constant 0 : index
    %c0_57 = arith.constant 0 : index
    %86 = vector.load %arg7[%c1_55, %c0_56, %c0_57] : memref<4x1x128xf32, #tpu.memory_space<vmem>>, vector<1x1x128xf32>
    %87 = vector.shape_cast %86 : vector<1x1x128xf32> to vector<1x128xf32>
    %88 = vector.broadcast %87 : vector<1x128xf32> to vector<16x128xf32>
    %89 = arith.addf %85, %88 : vector<16x128xf32>
    %cst_58 = arith.constant 0.000000e+00 : f32
    %90 = vector.broadcast %cst_58 : f32 to vector<16x128xf32>
    %91 = arith.cmpf oge, %89, %90 : vector<16x128xf32>
    %cst_59 = arith.constant 1.41421354 : f32
    %92 = vector.broadcast %cst_59 : f32 to vector<16x128xf32>
    %93 = arith.mulf %92, %89 : vector<16x128xf32>
    %cst_60 = arith.constant 0.282842726 : f32
    %94 = vector.broadcast %cst_60 : f32 to vector<16x128xf32>
    %95 = arith.mulf %94, %89 : vector<16x128xf32>
    %96 = arith.select %91, %93, %95 : vector<16x128xi1>, vector<16x128xf32>
    %97 = arith.truncf %96 : vector<16x128xf32> to vector<16x128xbf16>
    %c2_61 = arith.constant 2 : index
    %c0_62 = arith.constant 0 : index
    %c0_63 = arith.constant 0 : index
    %98 = vector.load %arg6[%c2_61, %c0_62, %c0_63] : memref<4x128x128xbf16, #tpu.memory_space<vmem>>, vector<1x128x128xbf16>
    %99 = vector.shape_cast %98 : vector<1x128x128xbf16> to vector<128x128xbf16>
    %cst_64 = arith.constant dense<0.000000e+00> : vector<16x128xf32>
    %100 = tpu.matmul %97, %99, %cst_64 {dimension_numbers = #tpu.dot_dimension_numbers<[1], [0], [0], [1], [0, 0, 1, 1], [], []>} : vector<16x128xbf16>, vector<128x128xbf16>, vector<16x128xf32> -> vector<16x128xf32>
    %c2_65 = arith.constant 2 : index
    %c0_66 = arith.constant 0 : index
    %c0_67 = arith.constant 0 : index
    %101 = vector.load %arg7[%c2_65, %c0_66, %c0_67] : memref<4x1x128xf32, #tpu.memory_space<vmem>>, vector<1x1x128xf32>
    %102 = vector.shape_cast %101 : vector<1x1x128xf32> to vector<1x128xf32>
    %103 = vector.broadcast %102 : vector<1x128xf32> to vector<16x128xf32>
    %104 = arith.addf %100, %103 : vector<16x128xf32>
    %cst_68 = arith.constant 0.000000e+00 : f32
    %105 = vector.broadcast %cst_68 : f32 to vector<16x128xf32>
    %106 = arith.cmpf oge, %104, %105 : vector<16x128xf32>
    %cst_69 = arith.constant 1.41421354 : f32
    %107 = vector.broadcast %cst_69 : f32 to vector<16x128xf32>
    %108 = arith.mulf %107, %104 : vector<16x128xf32>
    %cst_70 = arith.constant 0.282842726 : f32
    %109 = vector.broadcast %cst_70 : f32 to vector<16x128xf32>
    %110 = arith.mulf %109, %104 : vector<16x128xf32>
    %111 = arith.select %106, %108, %110 : vector<16x128xi1>, vector<16x128xf32>
    %112 = arith.truncf %111 : vector<16x128xf32> to vector<16x128xbf16>
    %c3_71 = arith.constant 3 : index
    %c0_72 = arith.constant 0 : index
    %c0_73 = arith.constant 0 : index
    %113 = vector.load %arg6[%c3_71, %c0_72, %c0_73] : memref<4x128x128xbf16, #tpu.memory_space<vmem>>, vector<1x128x128xbf16>
    %114 = vector.shape_cast %113 : vector<1x128x128xbf16> to vector<128x128xbf16>
    %cst_74 = arith.constant dense<0.000000e+00> : vector<16x128xf32>
    %115 = tpu.matmul %112, %114, %cst_74 {dimension_numbers = #tpu.dot_dimension_numbers<[1], [0], [0], [1], [0, 0, 1, 1], [], []>} : vector<16x128xbf16>, vector<128x128xbf16>, vector<16x128xf32> -> vector<16x128xf32>
    %c3_75 = arith.constant 3 : index
    %c0_76 = arith.constant 0 : index
    %c0_77 = arith.constant 0 : index
    %116 = vector.load %arg7[%c3_75, %c0_76, %c0_77] : memref<4x1x128xf32, #tpu.memory_space<vmem>>, vector<1x1x128xf32>
    %117 = vector.shape_cast %116 : vector<1x1x128xf32> to vector<1x128xf32>
    %118 = vector.broadcast %117 : vector<1x128xf32> to vector<16x128xf32>
    %119 = arith.addf %115, %118 : vector<16x128xf32>
    %cst_78 = arith.constant 0.000000e+00 : f32
    %120 = vector.broadcast %cst_78 : f32 to vector<16x128xf32>
    %121 = arith.cmpf oge, %119, %120 : vector<16x128xf32>
    %cst_79 = arith.constant 1.41421354 : f32
    %122 = vector.broadcast %cst_79 : f32 to vector<16x128xf32>
    %123 = arith.mulf %122, %119 : vector<16x128xf32>
    %cst_80 = arith.constant 0.282842726 : f32
    %124 = vector.broadcast %cst_80 : f32 to vector<16x128xf32>
    %125 = arith.mulf %124, %119 : vector<16x128xf32>
    %126 = arith.select %121, %123, %125 : vector<16x128xi1>, vector<16x128xf32>
    %c0_81 = arith.constant 0 : index
    %c0_82 = arith.constant 0 : index
    %127 = vector.load %arg1[%c0_81, %c0_82] : memref<16x128xf32, #tpu.memory_space<vmem>>, vector<16x128xf32>
    %128 = arith.addf %127, %126 : vector<16x128xf32>
    %c0_83 = arith.constant 0 : index
    %c0_84 = arith.constant 0 : index
    %129 = vector.load %arg8[%c0_83, %c0_84] : memref<16x128xf32, #tpu.memory_space<vmem>>, vector<16x128xf32>
    tpu.vector_store %arg8[%c0_83, %c0_84], %128 {strides = array<i32>} : memref<16x128xf32, #tpu.memory_space<vmem>>, vector<16x128xf32>,
    return
  }
  func.func @transform_0(%arg0: i32) -> (i32, i32) {
    %c0_i32 = arith.constant 0 : i32
    %c0_i32_0 = arith.constant 0 : i32
    return %arg0, %c0_i32 : i32, i32
  }
  func.func @transform_1(%arg0: i32) -> (i32, i32) {
    %c0_i32 = arith.constant 0 : i32
    %c0_i32_0 = arith.constant 0 : i32
    return %arg0, %c0_i32 : i32, i32
  }
  func.func @transform_2(%arg0: i32) -> (i32, i32) {
    %c0_i32 = arith.constant 0 : i32
    %c0_i32_0 = arith.constant 0 : i32
    %c0_i32_1 = arith.constant 0 : i32
    return %c0_i32, %c0_i32_0 : i32, i32
  }
  func.func @transform_3(%arg0: i32) -> (i32, i32, i32) {
    %c0_i32 = arith.constant 0 : i32
    %c0_i32_0 = arith.constant 0 : i32
    %c0_i32_1 = arith.constant 0 : i32
    %c0_i32_2 = arith.constant 0 : i32
    return %c0_i32, %c0_i32_0, %c0_i32_1 : i32, i32, i32
  }
  func.func @transform_4(%arg0: i32) -> (i32, i32, i32) {
    %c0_i32 = arith.constant 0 : i32
    %c0_i32_0 = arith.constant 0 : i32
    %c0_i32_1 = arith.constant 0 : i32
    %c0_i32_2 = arith.constant 0 : i32
    return %c0_i32, %c0_i32_0, %c0_i32_1 : i32, i32, i32
  }
  func.func @transform_5(%arg0: i32) -> (i32, i32, i32) {
    %c0_i32 = arith.constant 0 : i32
    %c0_i32_0 = arith.constant 0 : i32
    %c0_i32_1 = arith.constant 0 : i32
    %c0_i32_2 = arith.constant 0 : i32
    return %c0_i32, %c0_i32_0, %c0_i32_1 : i32, i32, i32
  }
  func.func @transform_6(%arg0: i32) -> (i32, i32, i32) {
    %c0_i32 = arith.constant 0 : i32
    %c0_i32_0 = arith.constant 0 : i32
    %c0_i32_1 = arith.constant 0 : i32
    %c0_i32_2 = arith.constant 0 : i32
    return %c0_i32, %c0_i32_0, %c0_i32_1 : i32, i32, i32
  }
  func.func @transform_7(%arg0: i32) -> (i32, i32) {
    %c0_i32 = arith.constant 0 : i32
    %c0_i32_0 = arith.constant 0 : i32
    return %arg0, %c0_i32 : i32, i32
  }
}

</mosaic_0001>

<llo_original>
// kernel: tpu_custom_call.1
$region0: #{tpu_custom_call.1}
  #allocation0 [shape = 'u32[]', space=smem, size = 0x4, offset = 0x4, fixed_abs, tag = 'smem constant byte address 0x4 - core index']
  #allocation1 [shape = 'u32[144,128]{1,0:T(1,128)}', space=vmem, size = 0x12000, scoped, tag = 'internal scratch']
  %s0 = inlined_call_operand.vmem [shape: f32[16,128], index: 0, kind: input, shape index: {}]
  %s1 = inlined_call_operand.vmem [shape: f32[16,1], index: 1, kind: input, shape index: {}]
  %s2 = inlined_call_operand.hbm [shape: f32[1,128], index: 2, kind: input, shape index: {}]
  %s3 = inlined_call_operand.hbm [shape: bf16[4,128,128], index: 3, kind: input, shape index: {}]
  %s4 = inlined_call_operand.vmem [shape: f32[4,1,128], index: 4, kind: input, shape index: {}]
  %s5 = inlined_call_operand.hbm [shape: bf16[4,128,128], index: 5, kind: input, shape index: {}]
  %s6 = inlined_call_operand.vmem [shape: f32[4,1,128], index: 6, kind: input, shape index: {}]
  %s7 = inlined_call_operand.hbm [shape: f32[16,128], index: 7, kind: output, shape index: {}]
  %s8 = sld [smem:[#allocation0]]
  $region50: #{tpu_custom_call.1} parent=0
    _
  %s10 = ssub.s32 1, %s8
  %s11 = scalar_select 0, %s10, %s8
  $region1: #{tpu_custom_call.1} parent=0
    #allocation2 [shape = 'u8[512]{0}', space=vmem, size = 0x400, scoped, tag = 'input window, operand 2, single buffered']
    #allocation3 [shape = 's32[1]{0}', space=sflag, size = 0x4, scoped, tag = 'scoped memory for tpu_custom_call.1']
    #allocation4 [shape = 's32[1]{0}', space=sflag, size = 0x4, scoped, tag = 'scoped memory for tpu_custom_call.1']
    #allocation5 [shape = 'u8[131072]{0}', space=vmem, size = 0x20000, scoped, tag = 'input window, operand 3, single buffered']
    #allocation6 [shape = 's32[1]{0}', space=sflag, size = 0x4, scoped, tag = 'scoped memory for tpu_custom_call.1']
    #allocation7 [shape = 'u8[131072]{0}', space=vmem, size = 0x20000, scoped, tag = 'input window, operand 5, single buffered']
    #allocation8 [shape = 'u8[8192]{0}', space=vmem, size = 0x2000, scoped, tag = 'output window, operand 0, single buffered']
    %12 = vsyncpa [#allocation3], 0
    %13 = vsyncpa [#allocation6], 0
    %14 = vsyncpa [#allocation4], 0
    // Predicated region
    $region2: #{tpu_custom_call.1} parent=1 // pred_check
      _
    $region3: #{tpu_custom_call.1} parent=1 // pred_check_branch
      %16 = sbr.rel (0) target = $region5
    $region4: #{tpu_custom_call.1} parent=1 // pred_region
      _
    $region5: #{tpu_custom_call.1} parent=1 // pred_fallthru
      _
    // Predicated region
    $region6: #{tpu_custom_call.1} parent=1 // pred_check
      _
    $region7: #{tpu_custom_call.1} parent=1 // pred_check_branch
      %18 = sbr.rel (0) target = $region9
    $region8: #{tpu_custom_call.1} parent=1 // pred_region
      _
    $region9: #{tpu_custom_call.1} parent=1 // pred_fallthru
      _
    // Predicated region
    $region10: #{tpu_custom_call.1} parent=1 // pred_check
      _
    $region11: #{tpu_custom_call.1} parent=1 // pred_check_branch
      %20 = sbr.rel (0) target = $region13
    $region12: #{tpu_custom_call.1} parent=1 // pred_region
      %s22 = ssub.s32 16, 16
      %23 = vsyncadd [#allocation3], %s22
      %s25 = sshll.u32 [#allocation2], 4
      %s26 = int_to_ptr.vmem [resolvable:$true] %s25
      %28 = dma.hbm_to_vmem [thread:$0]  %s2, 16, %s26, [#allocation3]
    $region13: #{tpu_custom_call.1} parent=1 // pred_fallthru
      _
    // Predicated region
    $region14: #{tpu_custom_call.1} parent=1 // pred_check
      _
    $region15: #{tpu_custom_call.1} parent=1 // pred_check_branch
      %30 = sbr.rel (0) target = $region17
    $region16: #{tpu_custom_call.1} parent=1 // pred_region
      %s32 = ssub.s32 4096, 4096
      %33 = vsyncadd [#allocation6], %s32
      %s34 = sshll.u32 [#allocation5], 4
      %s35 = int_to_ptr.vmem [resolvable:$true] %s34
      %40 = dma.hbm_to_vmem [thread:$0]  %s3, 4096, %s35, [#allocation6], 64, 64, 4
    $region17: #{tpu_custom_call.1} parent=1 // pred_fallthru
      _
    // Predicated region
    $region18: #{tpu_custom_call.1} parent=1 // pred_check
      _
    $region19: #{tpu_custom_call.1} parent=1 // pred_check_branch
      %42 = sbr.rel (0) target = $region21
    $region20: #{tpu_custom_call.1} parent=1 // pred_region
      _
    $region21: #{tpu_custom_call.1} parent=1 // pred_fallthru
      _
    // Predicated region
    $region22: #{tpu_custom_call.1} parent=1 // pred_check
      _
    $region23: #{tpu_custom_call.1} parent=1 // pred_check_branch
      %44 = sbr.rel (0) target = $region25
    $region24: #{tpu_custom_call.1} parent=1 // pred_region
      %s46 = ssub.s32 4096, 4096
      %47 = vsyncadd [#allocation6], %s46
      %s48 = sshll.u32 [#allocation7], 4
      %s49 = int_to_ptr.vmem [resolvable:$true] %s48
      %54 = dma.hbm_to_vmem [thread:$0]  %s5, 4096, %s49, [#allocation6], 64, 64, 4
    $region25: #{tpu_custom_call.1} parent=1 // pred_fallthru
      _
    // Predicated region
    $region26: #{tpu_custom_call.1} parent=1 // pred_check
      _
    $region27: #{tpu_custom_call.1} parent=1 // pred_check_branch
      %56 = sbr.rel (0) target = $region29
    $region28: #{tpu_custom_call.1} parent=1 // pred_region
      _
    $region29: #{tpu_custom_call.1} parent=1 // pred_fallthru
      _
    // Predicated region
    $region30: #{tpu_custom_call.1} parent=1 // pred_check
      _
    $region31: #{tpu_custom_call.1} parent=1 // pred_check_branch
      %58 = sbr.rel (0) target = $region33
    $region32: #{tpu_custom_call.1} parent=1 // pred_region
      %59 = dma.done [#allocation3], 16
    $region33: #{tpu_custom_call.1} parent=1 // pred_fallthru
      _
    // Predicated region
    $region34: #{tpu_custom_call.1} parent=1 // pred_check
      _
    $region35: #{tpu_custom_call.1} parent=1 // pred_check_branch
      %61 = sbr.rel (0) target = $region37
    $region36: #{tpu_custom_call.1} parent=1 // pred_region
      %62 = dma.done [#allocation6], 4096
    $region37: #{tpu_custom_call.1} parent=1 // pred_fallthru
      _
    // Predicated region
    $region38: #{tpu_custom_call.1} parent=1 // pred_check
      _
    $region39: #{tpu_custom_call.1} parent=1 // pred_check_branch
      %64 = sbr.rel (0) target = $region41
    $region40: #{tpu_custom_call.1} parent=1 // pred_region
      %65 = dma.done [#allocation6], 4096
    $region41: #{tpu_custom_call.1} parent=1 // pred_fallthru
      _
    %v67 = vld [vmem:[%s0] sm:$0xff]
    %v68 = vld [vmem:[%s0 + $0x8] sm:$0xff]
    %v69 = vpack.c.bf16 %v68, %v67
    %v70 = vld [vmem:[#allocation5] sm:$0xf]
    %v71 = vld [vmem:[#allocation5 + $0x4] sm:$0xf]
    %v72 = vld [vmem:[#allocation5 + $0x8] sm:$0xf]
    %v73 = vld [vmem:[#allocation5 + $0xc] sm:$0xf]
    %v74 = vld [vmem:[#allocation5 + $0x10] sm:$0xf]
    %v75 = vld [vmem:[#allocation5 + $0x14] sm:$0xf]
    %v76 = vld [vmem:[#allocation5 + $0x18] sm:$0xf]
    %v77 = vld [vmem:[#allocation5 + $0x1c] sm:$0xf]
    %v78 = vld [vmem:[#allocation5 + $0x20] sm:$0xf]
    %v79 = vld [vmem:[#allocation5 + $0x24] sm:$0xf]
    %v80 = vld [vmem:[#allocation5 + $0x28] sm:$0xf]
    %v81 = vld [vmem:[#allocation5 + $0x2c] sm:$0xf]
    %v82 = vld [vmem:[#allocation5 + $0x30] sm:$0xf]
    %v83 = vld [vmem:[#allocation5 + $0x34] sm:$0xf]
    %v84 = vld [vmem:[#allocation5 + $0x38] sm:$0xf]
    %v85 = vld [vmem:[#allocation5 + $0x3c] sm:$0xf]
    %v86 = vld [vmem:[%s4] sm:$0x1]
    %v88 = vlaneseq
    %v89 = vshrl.u32 %v88, 7
    %v90 = vsub.s32 0, %v89
    %v91 = vrot.slane %v86, %v90
    %v109 = vunpack.c.l.b16 %v70
    %v110 = vunpack.c.l.b16 %v71
    %v111 = vunpack.c.l.b16 %v72
    %v112 = vunpack.c.l.b16 %v73
    %v113 = vunpack.c.l.b16 %v74
    %v114 = vunpack.c.l.b16 %v75
    %v115 = vunpack.c.l.b16 %v76
    %v116 = vunpack.c.l.b16 %v77
    %v117 = vunpack.c.l.b16 %v78
    %v118 = vunpack.c.l.b16 %v79
    %v119 = vunpack.c.l.b16 %v80
    %v120 = vunpack.c.l.b16 %v81
    %v121 = vunpack.c.l.b16 %v82
    %v122 = vunpack.c.l.b16 %v83
    %v123 = vunpack.c.l.b16 %v84
    %v124 = vunpack.c.l.b16 %v85
    %v125 = vpack.c.b16 %v110, %v109
    %v126 = vpack.c.b16 %v112, %v111
    %v127 = vpack.c.b16 %v114, %v113
    %v128 = vpack.c.b16 %v116, %v115
    %v129 = vpack.c.b16 %v118, %v117
    %v130 = vpack.c.b16 %v120, %v119
    %v131 = vpack.c.b16 %v122, %v121
    %v132 = vpack.c.b16 %v124, %v123
    %141 = vmatprep.subr.bf16.mxu0 0
    %142 = vmatpush1.bf16.msra.mxu0 %v125
    %143 = vmatprep.subr.bf16.mxu0 0
    %144 = vmatpush1.bf16.msra.mxu0 %v126
    %145 = vmatprep.subr.bf16.mxu0 0
    %146 = vmatpush1.bf16.msra.mxu0 %v127
    %147 = vmatprep.subr.bf16.mxu0 0
    %148 = vmatpush1.bf16.msra.mxu0 %v128
    %149 = vmatprep.subr.bf16.mxu0 0
    %150 = vmatpush1.bf16.msra.mxu0 %v129
    %151 = vmatprep.subr.bf16.mxu0 0
    %152 = vmatpush1.bf16.msra.mxu0 %v130
    %153 = vmatprep.subr.bf16.mxu0 0
    %154 = vmatpush1.bf16.msra.mxu0 %v131
    %155 = vmatprep.subr.bf16.mxu0 0
    %156 = vmatpush1.bf16.msra.mxu0 %v132
    %157 = vmatprep.subr.bf16.mxu0 0
    %158 = vmatpush1.bf16.msra.mxu0 0
    %159 = vmatprep.subr.bf16.mxu0 0
    %160 = vmatpush1.bf16.msra.mxu0 0
    %161 = vmatprep.subr.bf16.mxu0 0
    %162 = vmatpush1.bf16.msra.mxu0 0
    %163 = vmatprep.subr.bf16.mxu0 0
    %164 = vmatpush1.bf16.msra.mxu0 0
    %165 = vmatprep.subr.bf16.mxu0 0
    %166 = vmatpush1.bf16.msra.mxu0 0
    %167 = vmatprep.subr.bf16.mxu0 0
    %168 = vmatpush1.bf16.msra.mxu0 0
    %169 = vmatprep.subr.bf16.mxu0 0
    %170 = vmatpush1.bf16.msra.mxu0 0
    %171 = vmatprep.subr.bf16.mxu0 0
    %172 = vmatpush1.bf16.msra.mxu0 0
    %173 = vmatprep.mubr.bf16.mxu0 0
    %174 = vmatmul.mubr.bf16.gmra.mrb[0].mxu0 %v69
    %v175 = vpop.f32.mrb[0].mxu0
    %v176 = vadd.f32 %v91, %v175
    %v177 = vpop.f32.mrb[0].mxu0
    %v178 = vpop.f32.mrb[0].mxu0
    %v179 = vadd.f32 %v91, %v178
    %v180 = vpop.f32.mrb[0].mxu0
    %181 = vdwg.mxu0
    %vm182 = vcmp.ge.f32.partialorder %v176, 0.0
    %vm183 = vcmp.ge.f32.partialorder %v179, 0.0
    %v184 = vmul.f32 %v176, 1.4142135
    %v185 = vmul.f32 %v179, 1.4142135
    %v186 = vmul.f32 %v176, 0.28284273
    %v187 = vmul.f32 %v179, 0.28284273
    %v188 = vsel %vm182, %v184, %v186
    %v189 = vsel %vm183, %v185, %v187
    %v190 = vpack.c.bf16 %v189, %v188
    %s191 = scalar_lea.vmem [#allocation5], 64
    %v192 = vld [vmem:[%s191] sm:$0xf]
    %v193 = vld [vmem:[%s191 + $0x4] sm:$0xf]
    %v194 = vld [vmem:[%s191 + $0x8] sm:$0xf]
    %v195 = vld [vmem:[%s191 + $0xc] sm:$0xf]
    %v196 = vld [vmem:[%s191 + $0x10] sm:$0xf]
    %v197 = vld [vmem:[%s191 + $0x14] sm:$0xf]
    %v198 = vld [vmem:[%s191 + $0x18] sm:$0xf]
    %v199 = vld [vmem:[%s191 + $0x1c] sm:$0xf]
    %v200 = vld [vmem:[%s191 + $0x20] sm:$0xf]
    %v201 = vld [vmem:[%s191 + $0x24] sm:$0xf]
    %v202 = vld [vmem:[%s191 + $0x28] sm:$0xf]
    %v203 = vld [vmem:[%s191 + $0x2c] sm:$0xf]
    %v204 = vld [vmem:[%s191 + $0x30] sm:$0xf]
    %v205 = vld [vmem:[%s191 + $0x34] sm:$0xf]
    %v206 = vld [vmem:[%s191 + $0x38] sm:$0xf]
    %v207 = vld [vmem:[%s191 + $0x3c] sm:$0xf]
    %s208 = scalar_lea.vmem %s4, 1
    %v209 = vld [vmem:[%s208] sm:$0x1]
    %v211 = vlaneseq
    %v212 = vshrl.u32 %v211, 7
    %v213 = vsub.s32 0, %v212
    %v214 = vrot.slane %v209, %v213
    %v232 = vunpack.c.l.b16 %v192
    %v233 = vunpack.c.l.b16 %v193
    %v234 = vunpack.c.l.b16 %v194
    %v235 = vunpack.c.l.b16 %v195
    %v236 = vunpack.c.l.b16 %v196
    %v237 = vunpack.c.l.b16 %v197
    %v238 = vunpack.c.l.b16 %v198
    %v239 = vunpack.c.l.b16 %v199
    %v240 = vunpack.c.l.b16 %v200
    %v241 = vunpack.c.l.b16 %v201
    %v242 = vunpack.c.l.b16 %v202
    %v243 = vunpack.c.l.b16 %v203
    %v244 = vunpack.c.l.b16 %v204
    %v245 = vunpack.c.l.b16 %v205
    %v246 = vunpack.c.l.b16 %v206
    %v247 = vunpack.c.l.b16 %v207
    %v248 = vpack.c.b16 %v233, %v232
    %v249 = vpack.c.b16 %v235, %v234
    %v250 = vpack.c.b16 %v237, %v236
    %v251 = vpack.c.b16 %v239, %v238
    %v252 = vpack.c.b16 %v241, %v240
    %v253 = vpack.c.b16 %v243, %v242
    %v254 = vpack.c.b16 %v245, %v244
    %v255 = vpack.c.b16 %v247, %v246
    %264 = vmatprep.subr.bf16.mxu0 0
    %265 = vmatpush1.bf16.msra.mxu0 %v248
    %266 = vmatprep.subr.bf16.mxu0 0
    %267 = vmatpush1.bf16.msra.mxu0 %v249
    %268 = vmatprep.subr.bf16.mxu0 0
    %269 = vmatpush1.bf16.msra.mxu0 %v250
    %270 = vmatprep.subr.bf16.mxu0 0
    %271 = vmatpush1.bf16.msra.mxu0 %v251
    %272 = vmatprep.subr.bf16.mxu0 0
    %273 = vmatpush1.bf16.msra.mxu0 %v252
    %274 = vmatprep.subr.bf16.mxu0 0
    %275 = vmatpush1.bf16.msra.mxu0 %v253
    %276 = vmatprep.subr.bf16.mxu0 0
    %277 = vmatpush1.bf16.msra.mxu0 %v254
    %278 = vmatprep.subr.bf16.mxu0 0
    %279 = vmatpush1.bf16.msra.mxu0 %v255
    %280 = vmatprep.subr.bf16.mxu0 0
    %281 = vmatpush1.bf16.msra.mxu0 0
    %282 = vmatprep.subr.bf16.mxu0 0
    %283 = vmatpush1.bf16.msra.mxu0 0
    %284 = vmatprep.subr.bf16.mxu0 0
    %285 = vmatpush1.bf16.msra.mxu0 0
    %286 = vmatprep.subr.bf16.mxu0 0
    %287 = vmatpush1.bf16.msra.mxu0 0
    %288 = vmatprep.subr.bf16.mxu0 0
    %289 = vmatpush1.bf16.msra.mxu0 0
    %290 = vmatprep.subr.bf16.mxu0 0
    %291 = vmatpush1.bf16.msra.mxu0 0
    %292 = vmatprep.subr.bf16.mxu0 0
    %293 = vmatpush1.bf16.msra.mxu0 0
    %294 = vmatprep.subr.bf16.mxu0 0
    %295 = vmatpush1.bf16.msra.mxu0 0
    %296 = vmatprep.mubr.bf16.mxu0 0
    %297 = vmatmul.mubr.bf16.gmra.mrb[0].mxu0 %v190
    %v298 = vpop.f32.mrb[0].mxu0
    %v299 = vadd.f32 %v214, %v298
    %v300 = vpop.f32.mrb[0].mxu0
    %v301 = vpop.f32.mrb[0].mxu0
    %v302 = vadd.f32 %v214, %v301
    %v303 = vpop.f32.mrb[0].mxu0
    %304 = vdwg.mxu0
    %vm305 = vcmp.ge.f32.partialorder %v299, 0.0
    %vm306 = vcmp.ge.f32.partialorder %v302, 0.0
    %v307 = vmul.f32 %v299, 1.4142135
    %v308 = vmul.f32 %v302, 1.4142135
    %v309 = vmul.f32 %v299, 0.28284273
    %v310 = vmul.f32 %v302, 0.28284273
    %v311 = vsel %vm305, %v307, %v309
    %v312 = vsel %vm306, %v308, %v310
    %v313 = vpack.c.bf16 %v312, %v311
    %s314 = scalar_lea.vmem [#allocation5], 128
    %v315 = vld [vmem:[%s314] sm:$0xf]
    %v316 = vld [vmem:[%s314 + $0x4] sm:$0xf]
    %v317 = vld [vmem:[%s314 + $0x8] sm:$0xf]
    %v318 = vld [vmem:[%s314 + $0xc] sm:$0xf]
    %v319 = vld [vmem:[%s314 + $0x10] sm:$0xf]
    %v320 = vld [vmem:[%s314 + $0x14] sm:$0xf]
    %v321 = vld [vmem:[%s314 + $0x18] sm:$0xf]
    %v322 = vld [vmem:[%s314 + $0x1c] sm:$0xf]
    %v323 = vld [vmem:[%s314 + $0x20] sm:$0xf]
    %v324 = vld [vmem:[%s314 + $0x24] sm:$0xf]
    %v325 = vld [vmem:[%s314 + $0x28] sm:$0xf]
    %v326 = vld [vmem:[%s314 + $0x2c] sm:$0xf]
    %v327 = vld [vmem:[%s314 + $0x30] sm:$0xf]
    %v328 = vld [vmem:[%s314 + $0x34] sm:$0xf]
    %v329 = vld [vmem:[%s314 + $0x38] sm:$0xf]
    %v330 = vld [vmem:[%s314 + $0x3c] sm:$0xf]
    %s331 = scalar_lea.vmem %s4, 2
    %v332 = vld [vmem:[%s331] sm:$0x1]
    %v334 = vlaneseq
    %v335 = vshrl.u32 %v334, 7
    %v336 = vsub.s32 0, %v335
    %v337 = vrot.slane %v332, %v336
    %v355 = vunpack.c.l.b16 %v315
    %v356 = vunpack.c.l.b16 %v316
    %v357 = vunpack.c.l.b16 %v317
    %v358 = vunpack.c.l.b16 %v318
    %v359 = vunpack.c.l.b16 %v319
    %v360 = vunpack.c.l.b16 %v320
    %v361 = vunpack.c.l.b16 %v321
    %v362 = vunpack.c.l.b16 %v322
    %v363 = vunpack.c.l.b16 %v323
    %v364 = vunpack.c.l.b16 %v324
    %v365 = vunpack.c.l.b16 %v325
    %v366 = vunpack.c.l.b16 %v326
    %v367 = vunpack.c.l.b16 %v327
    %v368 = vunpack.c.l.b16 %v328
    %v369 = vunpack.c.l.b16 %v329
    %v370 = vunpack.c.l.b16 %v330
    %v371 = vpack.c.b16 %v356, %v355
    %v372 = vpack.c.b16 %v358, %v357
    %v373 = vpack.c.b16 %v360, %v359
    %v374 = vpack.c.b16 %v362, %v361
    %v375 = vpack.c.b16 %v364, %v363
    %v376 = vpack.c.b16 %v366, %v365
    %v377 = vpack.c.b16 %v368, %v367
    %v378 = vpack.c.b16 %v370, %v369
    %387 = vmatprep.subr.bf16.mxu0 0
    %388 = vmatpush1.bf16.msra.mxu0 %v371
    %389 = vmatprep.subr.bf16.mxu0 0
    %390 = vmatpush1.bf16.msra.mxu0 %v372
    %391 = vmatprep.subr.bf16.mxu0 0
    %392 = vmatpush1.bf16.msra.mxu0 %v373
    %393 = vmatprep.subr.bf16.mxu0 0
    %394 = vmatpush1.bf16.msra.mxu0 %v374
    %395 = vmatprep.subr.bf16.mxu0 0
    %396 = vmatpush1.bf16.msra.mxu0 %v375
    %397 = vmatprep.subr.bf16.mxu0 0
    %398 = vmatpush1.bf16.msra.mxu0 %v376
    %399 = vmatprep.subr.bf16.mxu0 0
    %400 = vmatpush1.bf16.msra.mxu0 %v377
    %401 = vmatprep.subr.bf16.mxu0 0
    %402 = vmatpush1.bf16.msra.mxu0 %v378
    %403 = vmatprep.subr.bf16.mxu0 0
    %404 = vmatpush1.bf16.msra.mxu0 0
    %405 = vmatprep.subr.bf16.mxu0 0
    %406 = vmatpush1.bf16.msra.mxu0 0
    %407 = vmatprep.subr.bf16.mxu0 0
    %408 = vmatpush1.bf16.msra.mxu0 0
    %409 = vmatprep.subr.bf16.mxu0 0
    %410 = vmatpush1.bf16.msra.mxu0 0
    %411 = vmatprep.subr.bf16.mxu0 0
    %412 = vmatpush1.bf16.msra.mxu0 0
    %413 = vmatprep.subr.bf16.mxu0 0
    %414 = vmatpush1.bf16.msra.mxu0 0
    %415 = vmatprep.subr.bf16.mxu0 0
    %416 = vmatpush1.bf16.msra.mxu0 0
    %417 = vmatprep.subr.bf16.mxu0 0
    %418 = vmatpush1.bf16.msra.mxu0 0
    %419 = vmatprep.mubr.bf16.mxu0 0
    %420 = vmatmul.mubr.bf16.gmra.mrb[0].mxu0 %v313
    %v421 = vpop.f32.mrb[0].mxu0
    %v422 = vadd.f32 %v337, %v421
    %v423 = vpop.f32.mrb[0].mxu0
    %v424 = vpop.f32.mrb[0].mxu0
    %v425 = vadd.f32 %v337, %v424
    %v426 = vpop.f32.mrb[0].mxu0
    %427 = vdwg.mxu0
    %vm428 = vcmp.ge.f32.partialorder %v422, 0.0
    %vm429 = vcmp.ge.f32.partialorder %v425, 0.0
    %v430 = vmul.f32 %v422, 1.4142135
    %v431 = vmul.f32 %v425, 1.4142135
    %v432 = vmul.f32 %v422, 0.28284273
    %v433 = vmul.f32 %v425, 0.28284273
    %v434 = vsel %vm428, %v430, %v432
    %v435 = vsel %vm429, %v431, %v433
    %v436 = vpack.c.bf16 %v435, %v434
    %s437 = scalar_lea.vmem [#allocation5], 192
    %v438 = vld [vmem:[%s437] sm:$0xf]
    %v439 = vld [vmem:[%s437 + $0x4] sm:$0xf]
    %v440 = vld [vmem:[%s437 + $0x8] sm:$0xf]
    %v441 = vld [vmem:[%s437 + $0xc] sm:$0xf]
    %v442 = vld [vmem:[%s437 + $0x10] sm:$0xf]
    %v443 = vld [vmem:[%s437 + $0x14] sm:$0xf]
    %v444 = vld [vmem:[%s437 + $0x18] sm:$0xf]
    %v445 = vld [vmem:[%s437 + $0x1c] sm:$0xf]
    %v446 = vld [vmem:[%s437 + $0x20] sm:$0xf]
    %v447 = vld [vmem:[%s437 + $0x24] sm:$0xf]
    %v448 = vld [vmem:[%s437 + $0x28] sm:$0xf]
    %v449 = vld [vmem:[%s437 + $0x2c] sm:$0xf]
    %v450 = vld [vmem:[%s437 + $0x30] sm:$0xf]
    %v451 = vld [vmem:[%s437 + $0x34] sm:$0xf]
    %v452 = vld [vmem:[%s437 + $0x38] sm:$0xf]
    %v453 = vld [vmem:[%s437 + $0x3c] sm:$0xf]
    %s454 = scalar_lea.vmem %s4, 3
    %v455 = vld [vmem:[%s454] sm:$0x1]
    %v457 = vlaneseq
    %v458 = vshrl.u32 %v457, 7
    %v459 = vsub.s32 0, %v458
    %v460 = vrot.slane %v455, %v459
    %v478 = vunpack.c.l.b16 %v438
    %v479 = vunpack.c.l.b16 %v439
    %v480 = vunpack.c.l.b16 %v440
    %v481 = vunpack.c.l.b16 %v441
    %v482 = vunpack.c.l.b16 %v442
    %v483 = vunpack.c.l.b16 %v443
    %v484 = vunpack.c.l.b16 %v444
    %v485 = vunpack.c.l.b16 %v445
    %v486 = vunpack.c.l.b16 %v446
    %v487 = vunpack.c.l.b16 %v447
    %v488 = vunpack.c.l.b16 %v448
    %v489 = vunpack.c.l.b16 %v449
    %v490 = vunpack.c.l.b16 %v450
    %v491 = vunpack.c.l.b16 %v451
    %v492 = vunpack.c.l.b16 %v452
    %v493 = vunpack.c.l.b16 %v453
    %v494 = vpack.c.b16 %v479, %v478
    %v495 = vpack.c.b16 %v481, %v480
    %v496 = vpack.c.b16 %v483, %v482
    %v497 = vpack.c.b16 %v485, %v484
    %v498 = vpack.c.b16 %v487, %v486
    %v499 = vpack.c.b16 %v489, %v488
    %v500 = vpack.c.b16 %v491, %v490
    %v501 = vpack.c.b16 %v493, %v492
    %510 = vmatprep.subr.bf16.mxu0 0
    %511 = vmatpush1.bf16.msra.mxu0 %v494
    %512 = vmatprep.subr.bf16.mxu0 0
    %513 = vmatpush1.bf16.msra.mxu0 %v495
    %514 = vmatprep.subr.bf16.mxu0 0
    %515 = vmatpush1.bf16.msra.mxu0 %v496
    %516 = vmatprep.subr.bf16.mxu0 0
    %517 = vmatpush1.bf16.msra.mxu0 %v497
    %518 = vmatprep.subr.bf16.mxu0 0
    %519 = vmatpush1.bf16.msra.mxu0 %v498
    %520 = vmatprep.subr.bf16.mxu0 0
    %521 = vmatpush1.bf16.msra.mxu0 %v499
    %522 = vmatprep.subr.bf16.mxu0 0
    %523 = vmatpush1.bf16.msra.mxu0 %v500
    %524 = vmatprep.subr.bf16.mxu0 0
    %525 = vmatpush1.bf16.msra.mxu0 %v501
    %526 = vmatprep.subr.bf16.mxu0 0
    %527 = vmatpush1.bf16.msra.mxu0 0
    %528 = vmatprep.subr.bf16.mxu0 0
    %529 = vmatpush1.bf16.msra.mxu0 0
    %530 = vmatprep.subr.bf16.mxu0 0
    %531 = vmatpush1.bf16.msra.mxu0 0
    %532 = vmatprep.subr.bf16.mxu0 0
    %533 = vmatpush1.bf16.msra.mxu0 0
    %534 = vmatprep.subr.bf16.mxu0 0
    %535 = vmatpush1.bf16.msra.mxu0 0
    %536 = vmatprep.subr.bf16.mxu0 0
    %537 = vmatpush1.bf16.msra.mxu0 0
    %538 = vmatprep.subr.bf16.mxu0 0
    %539 = vmatpush1.bf16.msra.mxu0 0
    %540 = vmatprep.subr.bf16.mxu0 0
    %541 = vmatpush1.bf16.msra.mxu0 0
    %542 = vmatprep.mubr.bf16.mxu0 0
    %543 = vmatmul.mubr.bf16.gmra.mrb[0].mxu0 %v436
    %v544 = vpop.f32.mrb[0].mxu0
    %v545 = vadd.f32 %v460, %v544
    %v546 = vpop.f32.mrb[0].mxu0
    %v547 = vpop.f32.mrb[0].mxu0
    %v548 = vadd.f32 %v460, %v547
    %v549 = vpop.f32.mrb[0].mxu0
    %550 = vdwg.mxu0
    %vm551 = vcmp.ge.f32.partialorder %v545, 0.0
    %vm552 = vcmp.ge.f32.partialorder %v548, 0.0
    %v553 = vmul.f32 %v545, 1.4142135
    %v554 = vmul.f32 %v548, 1.4142135
    %v555 = vmul.f32 %v545, 0.28284273
    %v556 = vmul.f32 %v548, 0.28284273
    %v557 = vsel %vm551, %v553, %v555
    %v558 = vsel %vm552, %v554, %v556
    %v559 = vld [vmem:[%s1] sm:$0xff]
    %v560 = vld [vmem:[%s1 + $0x8] sm:$0xff]
    %v561 = vld [vmem:[#allocation2] sm:$0x1]
    %563 = vset.pattern.permute.xlu0 0
    %564 = vperm.xlu0 %563, %v559
    %v565 = vpop.permute.xlu0 %564
    %568 = vset.pattern.permute.xlu0 0
    %569 = vperm.xlu0 %568, %v560
    %v570 = vpop.permute.xlu0 %569
    %v573 = vlaneseq
    %v574 = vshrl.u32 %v573, 7
    %v575 = vsub.s32 0, %v574
    %v576 = vrot.slane %v561, %v575
    %v578 = vmul.f32 %v565, %v576
    %v579 = vmul.f32 %v570, %v576
    %v580 = vadd.f32 %v557, %v578
    %v581 = vadd.f32 %v558, %v579
    %v582 = vpack.c.bf16 %v581, %v580
    %v583 = vld [vmem:[#allocation7] sm:$0xf]
    %v584 = vld [vmem:[#allocation7 + $0x4] sm:$0xf]
    %v585 = vld [vmem:[#allocation7 + $0x8] sm:$0xf]
    %v586 = vld [vmem:[#allocation7 + $0xc] sm:$0xf]
    %v587 = vld [vmem:[#allocation7 + $0x10] sm:$0xf]
    %v588 = vld [vmem:[#allocation7 + $0x14] sm:$0xf]
    %v589 = vld [vmem:[#allocation7 + $0x18] sm:$0xf]
    %v590 = vld [vmem:[#allocation7 + $0x1c] sm:$0xf]
    %v591 = vld [vmem:[#allocation7 + $0x20] sm:$0xf]
    %v592 = vld [vmem:[#allocation7 + $0x24] sm:$0xf]
    %v593 = vld [vmem:[#allocation7 + $0x28] sm:$0xf]
    %v594 = vld [vmem:[#allocation7 + $0x2c] sm:$0xf]
    %v595 = vld [vmem:[#allocation7 + $0x30] sm:$0xf]
    %v596 = vld [vmem:[#allocation7 + $0x34] sm:$0xf]
    %v597 = vld [vmem:[#allocation7 + $0x38] sm:$0xf]
    %v598 = vld [vmem:[#allocation7 + $0x3c] sm:$0xf]
    %v599 = vld [vmem:[%s6] sm:$0x1]
    %v601 = vlaneseq
    %v602 = vshrl.u32 %v601, 7
    %v603 = vsub.s32 0, %v602
    %v604 = vrot.slane %v599, %v603
    %v622 = vunpack.c.l.b16 %v583
    %v623 = vunpack.c.l.b16 %v584
    %v624 = vunpack.c.l.b16 %v585
    %v625 = vunpack.c.l.b16 %v586
    %v626 = vunpack.c.l.b16 %v587
    %v627 = vunpack.c.l.b16 %v588
    %v628 = vunpack.c.l.b16 %v589
    %v629 = vunpack.c.l.b16 %v590
    %v630 = vunpack.c.l.b16 %v591
    %v631 = vunpack.c.l.b16 %v592
    %v632 = vunpack.c.l.b16 %v593
    %v633 = vunpack.c.l.b16 %v594
    %v634 = vunpack.c.l.b16 %v595
    %v635 = vunpack.c.l.b16 %v596
    %v636 = vunpack.c.l.b16 %v597
    %v637 = vunpack.c.l.b16 %v598
    %v638 = vpack.c.b16 %v623, %v622
    %v639 = vpack.c.b16 %v625, %v624
    %v640 = vpack.c.b16 %v627, %v626
    %v641 = vpack.c.b16 %v629, %v628
    %v642 = vpack.c.b16 %v631, %v630
    %v643 = vpack.c.b16 %v633, %v632
    %v644 = vpack.c.b16 %v635, %v634
    %v645 = vpack.c.b16 %v637, %v636
    %654 = vmatprep.subr.bf16.mxu0 0
    %655 = vmatpush1.bf16.msra.mxu0 %v638
    %656 = vmatprep.subr.bf16.mxu0 0
    %657 = vmatpush1.bf16.msra.mxu0 %v639
    %658 = vmatprep.subr.bf16.mxu0 0
    %659 = vmatpush1.bf16.msra.mxu0 %v640
    %660 = vmatprep.subr.bf16.mxu0 0
    %661 = vmatpush1.bf16.msra.mxu0 %v641
    %662 = vmatprep.subr.bf16.mxu0 0
    %663 = vmatpush1.bf16.msra.mxu0 %v642
    %664 = vmatprep.subr.bf16.mxu0 0
    %665 = vmatpush1.bf16.msra.mxu0 %v643
    %666 = vmatprep.subr.bf16.mxu0 0
    %667 = vmatpush1.bf16.msra.mxu0 %v644
    %668 = vmatprep.subr.bf16.mxu0 0
    %669 = vmatpush1.bf16.msra.mxu0 %v645
    %670 = vmatprep.subr.bf16.mxu0 0
    %671 = vmatpush1.bf16.msra.mxu0 0
    %672 = vmatprep.subr.bf16.mxu0 0
    %673 = vmatpush1.bf16.msra.mxu0 0
    %674 = vmatprep.subr.bf16.mxu0 0
    %675 = vmatpush1.bf16.msra.mxu0 0
    %676 = vmatprep.subr.bf16.mxu0 0
    %677 = vmatpush1.bf16.msra.mxu0 0
    %678 = vmatprep.subr.bf16.mxu0 0
    %679 = vmatpush1.bf16.msra.mxu0 0
    %680 = vmatprep.subr.bf16.mxu0 0
    %681 = vmatpush1.bf16.msra.mxu0 0
    %682 = vmatprep.subr.bf16.mxu0 0
    %683 = vmatpush1.bf16.msra.mxu0 0
    %684 = vmatprep.subr.bf16.mxu0 0
    %685 = vmatpush1.bf16.msra.mxu0 0
    %686 = vmatprep.mubr.bf16.mxu0 0
    %687 = vmatmul.mubr.bf16.gmra.mrb[0].mxu0 %v582
    %v688 = vpop.f32.mrb[0].mxu0
    %v689 = vadd.f32 %v604, %v688
    %v690 = vpop.f32.mrb[0].mxu0
    %v691 = vpop.f32.mrb[0].mxu0
    %v692 = vadd.f32 %v604, %v691
    %v693 = vpop.f32.mrb[0].mxu0
    %694 = vdwg.mxu0
    %vm695 = vcmp.ge.f32.partialorder %v689, 0.0
    %vm696 = vcmp.ge.f32.partialorder %v692, 0.0
    %v697 = vmul.f32 %v689, 1.4142135
    %v698 = vmul.f32 %v692, 1.4142135
    %v699 = vmul.f32 %v689, 0.28284273
    %v700 = vmul.f32 %v692, 0.28284273
    %v701 = vsel %vm695, %v697, %v699
    %v702 = vsel %vm696, %v698, %v700
    %v703 = vpack.c.bf16 %v702, %v701
    %s704 = scalar_lea.vmem [#allocation7], 64
    %v705 = vld [vmem:[%s704] sm:$0xf]
    %v706 = vld [vmem:[%s704 + $0x4] sm:$0xf]
    %v707 = vld [vmem:[%s704 + $0x8] sm:$0xf]
    %v708 = vld [vmem:[%s704 + $0xc] sm:$0xf]
    %v709 = vld [vmem:[%s704 + $0x10] sm:$0xf]
    %v710 = vld [vmem:[%s704 + $0x14] sm:$0xf]
    %v711 = vld [vmem:[%s704 + $0x18] sm:$0xf]
    %v712 = vld [vmem:[%s704 + $0x1c] sm:$0xf]
    %v713 = vld [vmem:[%s704 + $0x20] sm:$0xf]
    %v714 = vld [vmem:[%s704 + $0x24] sm:$0xf]
    %v715 = vld [vmem:[%s704 + $0x28] sm:$0xf]
    %v716 = vld [vmem:[%s704 + $0x2c] sm:$0xf]
    %v717 = vld [vmem:[%s704 + $0x30] sm:$0xf]
    %v718 = vld [vmem:[%s704 + $0x34] sm:$0xf]
    %v719 = vld [vmem:[%s704 + $0x38] sm:$0xf]
    %v720 = vld [vmem:[%s704 + $0x3c] sm:$0xf]
    %s721 = scalar_lea.vmem %s6, 1
    %v722 = vld [vmem:[%s721] sm:$0x1]
    %v724 = vlaneseq
    %v725 = vshrl.u32 %v724, 7
    %v726 = vsub.s32 0, %v725
    %v727 = vrot.slane %v722, %v726
    %v745 = vunpack.c.l.b16 %v705
    %v746 = vunpack.c.l.b16 %v706
    %v747 = vunpack.c.l.b16 %v707
    %v748 = vunpack.c.l.b16 %v708
    %v749 = vunpack.c.l.b16 %v709
    %v750 = vunpack.c.l.b16 %v710
    %v751 = vunpack.c.l.b16 %v711
    %v752 = vunpack.c.l.b16 %v712
    %v753 = vunpack.c.l.b16 %v713
    %v754 = vunpack.c.l.b16 %v714
    %v755 = vunpack.c.l.b16 %v715
    %v756 = vunpack.c.l.b16 %v716
    %v757 = vunpack.c.l.b16 %v717
    %v758 = vunpack.c.l.b16 %v718
    %v759 = vunpack.c.l.b16 %v719
    %v760 = vunpack.c.l.b16 %v720
    %v761 = vpack.c.b16 %v746, %v745
    %v762 = vpack.c.b16 %v748, %v747
    %v763 = vpack.c.b16 %v750, %v749
    %v764 = vpack.c.b16 %v752, %v751
    %v765 = vpack.c.b16 %v754, %v753
    %v766 = vpack.c.b16 %v756, %v755
    %v767 = vpack.c.b16 %v758, %v757
    %v768 = vpack.c.b16 %v760, %v759
    %777 = vmatprep.subr.bf16.mxu0 0
    %778 = vmatpush1.bf16.msra.mxu0 %v761
    %779 = vmatprep.subr.bf16.mxu0 0
    %780 = vmatpush1.bf16.msra.mxu0 %v762
    %781 = vmatprep.subr.bf16.mxu0 0
    %782 = vmatpush1.bf16.msra.mxu0 %v763
    %783 = vmatprep.subr.bf16.mxu0 0
    %784 = vmatpush1.bf16.msra.mxu0 %v764
    %785 = vmatprep.subr.bf16.mxu0 0
    %786 = vmatpush1.bf16.msra.mxu0 %v765
    %787 = vmatprep.subr.bf16.mxu0 0
    %788 = vmatpush1.bf16.msra.mxu0 %v766
    %789 = vmatprep.subr.bf16.mxu0 0
    %790 = vmatpush1.bf16.msra.mxu0 %v767
    %791 = vmatprep.subr.bf16.mxu0 0
    %792 = vmatpush1.bf16.msra.mxu0 %v768
    %793 = vmatprep.subr.bf16.mxu0 0
    %794 = vmatpush1.bf16.msra.mxu0 0
    %795 = vmatprep.subr.bf16.mxu0 0
    %796 = vmatpush1.bf16.msra.mxu0 0
    %797 = vmatprep.subr.bf16.mxu0 0
    %798 = vmatpush1.bf16.msra.mxu0 0
    %799 = vmatprep.subr.bf16.mxu0 0
    %800 = vmatpush1.bf16.msra.mxu0 0
    %801 = vmatprep.subr.bf16.mxu0 0
    %802 = vmatpush1.bf16.msra.mxu0 0
    %803 = vmatprep.subr.bf16.mxu0 0
    %804 = vmatpush1.bf16.msra.mxu0 0
    %805 = vmatprep.subr.bf16.mxu0 0
    %806 = vmatpush1.bf16.msra.mxu0 0
    %807 = vmatprep.subr.bf16.mxu0 0
    %808 = vmatpush1.bf16.msra.mxu0 0
    %809 = vmatprep.mubr.bf16.mxu0 0
    %810 = vmatmul.mubr.bf16.gmra.mrb[0].mxu0 %v703
    %v811 = vpop.f32.mrb[0].mxu0
    %v812 = vadd.f32 %v727, %v811
    %v813 = vpop.f32.mrb[0].mxu0
    %v814 = vpop.f32.mrb[0].mxu0
    %v815 = vadd.f32 %v727, %v814
    %v816 = vpop.f32.mrb[0].mxu0
    %817 = vdwg.mxu0
    %vm818 = vcmp.ge.f32.partialorder %v812, 0.0
    %vm819 = vcmp.ge.f32.partialorder %v815, 0.0
    %v820 = vmul.f32 %v812, 1.4142135
    %v821 = vmul.f32 %v815, 1.4142135
    %v822 = vmul.f32 %v812, 0.28284273
    %v823 = vmul.f32 %v815, 0.28284273
    %v824 = vsel %vm818, %v820, %v822
    %v825 = vsel %vm819, %v821, %v823
    %v826 = vpack.c.bf16 %v825, %v824
    %s827 = scalar_lea.vmem [#allocation7], 128
    %v828 = vld [vmem:[%s827] sm:$0xf]
    %v829 = vld [vmem:[%s827 + $0x4] sm:$0xf]
    %v830 = vld [vmem:[%s827 + $0x8] sm:$0xf]
    %v831 = vld [vmem:[%s827 + $0xc] sm:$0xf]
    %v832 = vld [vmem:[%s827 + $0x10] sm:$0xf]
    %v833 = vld [vmem:[%s827 + $0x14] sm:$0xf]
    %v834 = vld [vmem:[%s827 + $0x18] sm:$0xf]
    %v835 = vld [vmem:[%s827 + $0x1c] sm:$0xf]
    %v836 = vld [vmem:[%s827 + $0x20] sm:$0xf]
    %v837 = vld [vmem:[%s827 + $0x24] sm:$0xf]
    %v838 = vld [vmem:[%s827 + $0x28] sm:$0xf]
    %v839 = vld [vmem:[%s827 + $0x2c] sm:$0xf]
    %v840 = vld [vmem:[%s827 + $0x30] sm:$0xf]
    %v841 = vld [vmem:[%s827 + $0x34] sm:$0xf]
    %v842 = vld [vmem:[%s827 + $0x38] sm:$0xf]
    %v843 = vld [vmem:[%s827 + $0x3c] sm:$0xf]
    %s844 = scalar_lea.vmem %s6, 2
    %v845 = vld [vmem:[%s844] sm:$0x1]
    %v847 = vlaneseq
    %v848 = vshrl.u32 %v847, 7
    %v849 = vsub.s32 0, %v848
    %v850 = vrot.slane %v845, %v849
    %v868 = vunpack.c.l.b16 %v828
    %v869 = vunpack.c.l.b16 %v829
    %v870 = vunpack.c.l.b16 %v830
    %v871 = vunpack.c.l.b16 %v831
    %v872 = vunpack.c.l.b16 %v832
    %v873 = vunpack.c.l.b16 %v833
    %v874 = vunpack.c.l.b16 %v834
    %v875 = vunpack.c.l.b16 %v835
    %v876 = vunpack.c.l.b16 %v836
    %v877 = vunpack.c.l.b16 %v837
    %v878 = vunpack.c.l.b16 %v838
    %v879 = vunpack.c.l.b16 %v839
    %v880 = vunpack.c.l.b16 %v840
    %v881 = vunpack.c.l.b16 %v841
    %v882 = vunpack.c.l.b16 %v842
    %v883 = vunpack.c.l.b16 %v843
    %v884 = vpack.c.b16 %v869, %v868
    %v885 = vpack.c.b16 %v871, %v870
    %v886 = vpack.c.b16 %v873, %v872
    %v887 = vpack.c.b16 %v875, %v874
    %v888 = vpack.c.b16 %v877, %v876
    %v889 = vpack.c.b16 %v879, %v878
    %v890 = vpack.c.b16 %v881, %v880
    %v891 = vpack.c.b16 %v883, %v882
    %900 = vmatprep.subr.bf16.mxu0 0
    %901 = vmatpush1.bf16.msra.mxu0 %v884
    %902 = vmatprep.subr.bf16.mxu0 0
    %903 = vmatpush1.bf16.msra.mxu0 %v885
    %904 = vmatprep.subr.bf16.mxu0 0
    %905 = vmatpush1.bf16.msra.mxu0 %v886
    %906 = vmatprep.subr.bf16.mxu0 0
    %907 = vmatpush1.bf16.msra.mxu0 %v887
    %908 = vmatprep.subr.bf16.mxu0 0
    %909 = vmatpush1.bf16.msra.mxu0 %v888
    %910 = vmatprep.subr.bf16.mxu0 0
    %911 = vmatpush1.bf16.msra.mxu0 %v889
    %912 = vmatprep.subr.bf16.mxu0 0
    %913 = vmatpush1.bf16.msra.mxu0 %v890
    %914 = vmatprep.subr.bf16.mxu0 0
    %915 = vmatpush1.bf16.msra.mxu0 %v891
    %916 = vmatprep.subr.bf16.mxu0 0
    %917 = vmatpush1.bf16.msra.mxu0 0
    %918 = vmatprep.subr.bf16.mxu0 0
    %919 = vmatpush1.bf16.msra.mxu0 0
    %920 = vmatprep.subr.bf16.mxu0 0
    %921 = vmatpush1.bf16.msra.mxu0 0
    %922 = vmatprep.subr.bf16.mxu0 0
    %923 = vmatpush1.bf16.msra.mxu0 0
    %924 = vmatprep.subr.bf16.mxu0 0
    %925 = vmatpush1.bf16.msra.mxu0 0
    %926 = vmatprep.subr.bf16.mxu0 0
    %927 = vmatpush1.bf16.msra.mxu0 0
    %928 = vmatprep.subr.bf16.mxu0 0
    %929 = vmatpush1.bf16.msra.mxu0 0
    %930 = vmatprep.subr.bf16.mxu0 0
    %931 = vmatpush1.bf16.msra.mxu0 0
    %932 = vmatprep.mubr.bf16.mxu0 0
    %933 = vmatmul.mubr.bf16.gmra.mrb[0].mxu0 %v826
    %v934 = vpop.f32.mrb[0].mxu0
    %v935 = vadd.f32 %v850, %v934
    %v936 = vpop.f32.mrb[0].mxu0
    %v937 = vpop.f32.mrb[0].mxu0
    %v938 = vadd.f32 %v850, %v937
    %v939 = vpop.f32.mrb[0].mxu0
    %940 = vdwg.mxu0
    %vm941 = vcmp.ge.f32.partialorder %v935, 0.0
    %vm942 = vcmp.ge.f32.partialorder %v938, 0.0
    %v943 = vmul.f32 %v935, 1.4142135
    %v944 = vmul.f32 %v938, 1.4142135
    %v945 = vmul.f32 %v935, 0.28284273
    %v946 = vmul.f32 %v938, 0.28284273
    %v947 = vsel %vm941, %v943, %v945
    %v948 = vsel %vm942, %v944, %v946
    %v949 = vpack.c.bf16 %v948, %v947
    %s950 = scalar_lea.vmem [#allocation7], 192
    %v951 = vld [vmem:[%s950] sm:$0xf]
    %v952 = vld [vmem:[%s950 + $0x4] sm:$0xf]
    %v953 = vld [vmem:[%s950 + $0x8] sm:$0xf]
    %v954 = vld [vmem:[%s950 + $0xc] sm:$0xf]
    %v955 = vld [vmem:[%s950 + $0x10] sm:$0xf]
    %v956 = vld [vmem:[%s950 + $0x14] sm:$0xf]
    %v957 = vld [vmem:[%s950 + $0x18] sm:$0xf]
    %v958 = vld [vmem:[%s950 + $0x1c] sm:$0xf]
    %v959 = vld [vmem:[%s950 + $0x20] sm:$0xf]
    %v960 = vld [vmem:[%s950 + $0x24] sm:$0xf]
    %v961 = vld [vmem:[%s950 + $0x28] sm:$0xf]
    %v962 = vld [vmem:[%s950 + $0x2c] sm:$0xf]
    %v963 = vld [vmem:[%s950 + $0x30] sm:$0xf]
    %v964 = vld [vmem:[%s950 + $0x34] sm:$0xf]
    %v965 = vld [vmem:[%s950 + $0x38] sm:$0xf]
    %v966 = vld [vmem:[%s950 + $0x3c] sm:$0xf]
    %s967 = scalar_lea.vmem %s6, 3
    %v968 = vld [vmem:[%s967] sm:$0x1]
    %v970 = vlaneseq
    %v971 = vshrl.u32 %v970, 7
    %v972 = vsub.s32 0, %v971
    %v973 = vrot.slane %v968, %v972
    %v991 = vunpack.c.l.b16 %v951
    %v992 = vunpack.c.l.b16 %v952
    %v993 = vunpack.c.l.b16 %v953
    %v994 = vunpack.c.l.b16 %v954
    %v995 = vunpack.c.l.b16 %v955
    %v996 = vunpack.c.l.b16 %v956
    %v997 = vunpack.c.l.b16 %v957
    %v998 = vunpack.c.l.b16 %v958
    %v999 = vunpack.c.l.b16 %v959
    %v1000 = vunpack.c.l.b16 %v960
    %v1001 = vunpack.c.l.b16 %v961
    %v1002 = vunpack.c.l.b16 %v962
    %v1003 = vunpack.c.l.b16 %v963
    %v1004 = vunpack.c.l.b16 %v964
    %v1005 = vunpack.c.l.b16 %v965
    %v1006 = vunpack.c.l.b16 %v966
    %v1007 = vpack.c.b16 %v992, %v991
    %v1008 = vpack.c.b16 %v994, %v993
    %v1009 = vpack.c.b16 %v996, %v995
    %v1010 = vpack.c.b16 %v998, %v997
    %v1011 = vpack.c.b16 %v1000, %v999
    %v1012 = vpack.c.b16 %v1002, %v1001
    %v1013 = vpack.c.b16 %v1004, %v1003
    %v1014 = vpack.c.b16 %v1006, %v1005
    %1023 = vmatprep.subr.bf16.mxu0 0
    %1024 = vmatpush1.bf16.msra.mxu0 %v1007
    %1025 = vmatprep.subr.bf16.mxu0 0
    %1026 = vmatpush1.bf16.msra.mxu0 %v1008
    %1027 = vmatprep.subr.bf16.mxu0 0
    %1028 = vmatpush1.bf16.msra.mxu0 %v1009
    %1029 = vmatprep.subr.bf16.mxu0 0
    %1030 = vmatpush1.bf16.msra.mxu0 %v1010
    %1031 = vmatprep.subr.bf16.mxu0 0
    %1032 = vmatpush1.bf16.msra.mxu0 %v1011
    %1033 = vmatprep.subr.bf16.mxu0 0
    %1034 = vmatpush1.bf16.msra.mxu0 %v1012
    %1035 = vmatprep.subr.bf16.mxu0 0
    %1036 = vmatpush1.bf16.msra.mxu0 %v1013
    %1037 = vmatprep.subr.bf16.mxu0 0
    %1038 = vmatpush1.bf16.msra.mxu0 %v1014
    %1039 = vmatprep.subr.bf16.mxu0 0
    %1040 = vmatpush1.bf16.msra.mxu0 0
    %1041 = vmatprep.subr.bf16.mxu0 0
    %1042 = vmatpush1.bf16.msra.mxu0 0
    %1043 = vmatprep.subr.bf16.mxu0 0
    %1044 = vmatpush1.bf16.msra.mxu0 0
    %1045 = vmatprep.subr.bf16.mxu0 0
    %1046 = vmatpush1.bf16.msra.mxu0 0
    %1047 = vmatprep.subr.bf16.mxu0 0
    %1048 = vmatpush1.bf16.msra.mxu0 0
    %1049 = vmatprep.subr.bf16.mxu0 0
    %1050 = vmatpush1.bf16.msra.mxu0 0
    %1051 = vmatprep.subr.bf16.mxu0 0
    %1052 = vmatpush1.bf16.msra.mxu0 0
    %1053 = vmatprep.subr.bf16.mxu0 0
    %1054 = vmatpush1.bf16.msra.mxu0 0
    %1055 = vmatprep.mubr.bf16.mxu0 0
    %1056 = vmatmul.mubr.bf16.gmra.mrb[0].mxu0 %v949
    %v1057 = vpop.f32.mrb[0].mxu0
    %v1058 = vadd.f32 %v973, %v1057
    %v1059 = vpop.f32.mrb[0].mxu0
    %v1060 = vpop.f32.mrb[0].mxu0
    %v1061 = vadd.f32 %v973, %v1060
    %v1062 = vpop.f32.mrb[0].mxu0
    %1063 = vdwg.mxu0
    %vm1064 = vcmp.ge.f32.partialorder %v1058, 0.0
    %vm1065 = vcmp.ge.f32.partialorder %v1061, 0.0
    %v1066 = vmul.f32 %v1058, 1.4142135
    %v1067 = vmul.f32 %v1061, 1.4142135
    %v1068 = vmul.f32 %v1058, 0.28284273
    %v1069 = vmul.f32 %v1061, 0.28284273
    %v1070 = vsel %vm1064, %v1066, %v1068
    %v1071 = vsel %vm1065, %v1067, %v1069
    %v1072 = vadd.f32 %v67, %v1070
    %v1073 = vadd.f32 %v68, %v1071
    %1074 = vst [vmem:[#allocation8] sm:$0xff] %v1072
    %1075 = vst [vmem:[#allocation8 + $0x8] sm:$0xff] %v1073
    // Predicated region
    $region42: #{tpu_custom_call.1} parent=1 // pred_check
      _
    $region43: #{tpu_custom_call.1} parent=1 // pred_check_branch
      %1077 = sbr.rel (0) target = $region45
    $region44: #{tpu_custom_call.1} parent=1 // pred_region
      %s1079 = ssub.s32 256, 256
      %1080 = vsyncadd [#allocation4], %s1079
      %s1081 = sshll.u32 [#allocation8], 4
      %s1082 = int_to_ptr.vmem [resolvable:$true] %s1081
      %1087 = dma.vmem_to_hbm [thread:$0]  %s1082, 256, %s7, [#allocation4], 128, 128, 8
    $region45: #{tpu_custom_call.1} parent=1 // pred_fallthru
      _
    // Predicated region
    $region46: #{tpu_custom_call.1} parent=1 // pred_check
      _
    $region47: #{tpu_custom_call.1} parent=1 // pred_check_branch
      %1089 = sbr.rel (0) target = $region49
    $region48: #{tpu_custom_call.1} parent=1 // pred_region
      %1090 = dma.done [#allocation4], 256
    $region49: #{tpu_custom_call.1} parent=1 // pred_fallthru
      _
    %1091 = vsyncpa [#allocation3], 1
    %1092 = vsyncpa [#allocation6], 1
    %1093 = vsyncpa [#allocation4], 1

// kernel: tpu_custom_call.1
$region0: #{tpu_custom_call.1}
  #allocation0 [shape = 'u32[]', space=smem, size = 0x4, offset = 0x4, fixed_abs, tag = 'smem constant byte address 0x4 - core index']
  #allocation1 [shape = 'u32[144,128]{1,0:T(1,128)}', space=vmem, size = 0x12000, scoped, tag = 'internal scratch']
  %s0 = inlined_call_operand.vmem [shape: f32[16,128], index: 0, kind: input, shape index: {}]
  %s1 = inlined_call_operand.vmem [shape: f32[16,1], index: 1, kind: input, shape index: {}]
  %s2 = inlined_call_operand.hbm [shape: f32[1,128], index: 2, kind: input, shape index: {}]
  %s3 = inlined_call_operand.hbm [shape: bf16[4,128,128], index: 3, kind: input, shape index: {}]
  %s4 = inlined_call_operand.vmem [shape: f32[4,1,128], index: 4, kind: input, shape index: {}]
  %s5 = inlined_call_operand.hbm [shape: bf16[4,128,128], index: 5, kind: input, shape index: {}]
  %s6 = inlined_call_operand.vmem [shape: f32[4,1,128], index: 6, kind: input, shape index: {}]
  %s7 = inlined_call_operand.hbm [shape: f32[16,128], index: 7, kind: output, shape index: {}]
  %s8 = sld [smem:[#allocation0]]
  $region50: #{tpu_custom_call.1} parent=0
    _
  %s10 = ssub.s32 1, %s8
  %s11 = scalar_select 0, %s10, %s8
  $region1: #{tpu_custom_call.1} parent=0
    #allocation2 [shape = 'u8[512]{0}', space=vmem, size = 0x400, scoped, tag = 'input window, operand 2, single buffered']
    #allocation3 [shape = 's32[1]{0}', space=sflag, size = 0x4, scoped, tag = 'scoped memory for tpu_custom_call.1']
    #allocation4 [shape = 's32[1]{0}', space=sflag, size = 0x4, scoped, tag = 'scoped memory for tpu_custom_call.1']
    #allocation5 [shape = 'u8[131072]{0}', space=vmem, size = 0x20000, scoped, tag = 'input window, operand 3, single buffered']
    #allocation6 [shape = 's32[1]{0}', space=sflag, size = 0x4, scoped, tag = 'scoped memory for tpu_custom_call.1']
    #allocation7 [shape = 'u8[131072]{0}', space=vmem, size = 0x20000, scoped, tag = 'input window, operand 5, single buffered']
    #allocation8 [shape = 'u8[8192]{0}', space=vmem, size = 0x2000, scoped, tag = 'output window, operand 0, single buffered']
    %12 = vsyncpa [#allocation3], 0
    %13 = vsyncpa [#allocation6], 0
    %14 = vsyncpa [#allocation4], 0
    // Predicated region
    $region2: #{tpu_custom_call.1} parent=1 // pred_check
      _
    $region3: #{tpu_custom_call.1} parent=1 // pred_check_branch
      %16 = sbr.rel (0) target = $region5
    $region4: #{tpu_custom_call.1} parent=1 // pred_region
      _
    $region5: #{tpu_custom_call.1} parent=1 // pred_fallthru
      _
    // Predicated region
    $region6: #{tpu_custom_call.1} parent=1 // pred_check
      _
    $region7: #{tpu_custom_call.1} parent=1 // pred_check_branch
      %18 = sbr.rel (0) target = $region9
    $region8: #{tpu_custom_call.1} parent=1 // pred_region
      _
    $region9: #{tpu_custom_call.1} parent=1 // pred_fallthru
      _
    // Predicated region
    $region10: #{tpu_custom_call.1} parent=1 // pred_check
      _
    $region11: #{tpu_custom_call.1} parent=1 // pred_check_branch
      %20 = sbr.rel (0) target = $region13
    $region12: #{tpu_custom_call.1} parent=1 // pred_region
      %s22 = ssub.s32 16, 16
      %23 = vsyncadd [#allocation3], %s22
      %s25 = sshll.u32 [#allocation2], 4
      %s26 = int_to_ptr.vmem [resolvable:$true] %s25
      %28 = dma.hbm_to_vmem [thread:$0]  %s2, 16, %s26, [#allocation3]
    $region13: #{tpu_custom_call.1} parent=1 // pred_fallthru
      _
    // Predicated region
    $region14: #{tpu_custom_call.1} parent=1 // pred_check
      _
    $region15: #{tpu_custom_call.1} parent=1 // pred_check_branch
      %30 = sbr.rel (0) target = $region17
    $region16: #{tpu_custom_call.1} parent=1 // pred_region
      %s32 = ssub.s32 4096, 4096
      %33 = vsyncadd [#allocation6], %s32
      %s34 = sshll.u32 [#allocation5], 4
      %s35 = int_to_ptr.vmem [resolvable:$true] %s34
      %40 = dma.hbm_to_vmem [thread:$0]  %s3, 4096, %s35, [#allocation6], 64, 64, 4
    $region17: #{tpu_custom_call.1} parent=1 // pred_fallthru
      _
    // Predicated region
    $region18: #{tpu_custom_call.1} parent=1 // pred_check
      _
    $region19: #{tpu_custom_call.1} parent=1 // pred_check_branch
      %42 = sbr.rel (0) target = $region21
    $region20: #{tpu_custom_call.1} parent=1 // pred_region
      _
    $region21: #{tpu_custom_call.1} parent=1 // pred_fallthru
      _
    // Predicated region
    $region22: #{tpu_custom_call.1} parent=1 // pred_check
      _
    $region23: #{tpu_custom_call.1} parent=1 // pred_check_branch
      %44 = sbr.rel (0) target = $region25
    $region24: #{tpu_custom_call.1} parent=1 // pred_region
      %s46 = ssub.s32 4096, 4096
      %47 = vsyncadd [#allocation6], %s46
      %s48 = sshll.u32 [#allocation7], 4
      %s49 = int_to_ptr.vmem [resolvable:$true] %s48
      %54 = dma.hbm_to_vmem [thread:$0]  %s5, 4096, %s49, [#allocation6], 64, 64, 4
    $region25: #{tpu_custom_call.1} parent=1 // pred_fallthru
      _
    // Predicated region
    $region26: #{tpu_custom_call.1} parent=1 // pred_check
      _
    $region27: #{tpu_custom_call.1} parent=1 // pred_check_branch
      %56 = sbr.rel (0) target = $region29
    $region28: #{tpu_custom_call.1} parent=1 // pred_region
      _
    $region29: #{tpu_custom_call.1} parent=1 // pred_fallthru
      _
    // Predicated region
    $region30: #{tpu_custom_call.1} parent=1 // pred_check
      _
    $region31: #{tpu_custom_call.1} parent=1 // pred_check_branch
      %58 = sbr.rel (0) target = $region33
    $region32: #{tpu_custom_call.1} parent=1 // pred_region
      %59 = dma.done [#allocation3], 16
    $region33: #{tpu_custom_call.1} parent=1 // pred_fallthru
      _
    // Predicated region
    $region34: #{tpu_custom_call.1} parent=1 // pred_check
      _
    $region35: #{tpu_custom_call.1} parent=1 // pred_check_branch
      %61 = sbr.rel (0) target = $region37
    $region36: #{tpu_custom_call.1} parent=1 // pred_region
      %62 = dma.done [#allocation6], 4096
    $region37: #{tpu_custom_call.1} parent=1 // pred_fallthru
      _
    // Predicated region
    $region38: #{tpu_custom_call.1} parent=1 // pred_check
      _
    $region39: #{tpu_custom_call.1} parent=1 // pred_check_branch
      %64 = sbr.rel (0) target = $region41
    $region40: #{tpu_custom_call.1} parent=1 // pred_region
      %65 = dma.done [#allocation6], 4096
    $region41: #{tpu_custom_call.1} parent=1 // pred_fallthru
      _
    %v67 = vld [vmem:[%s0] sm:$0xff]
    %v68 = vld [vmem:[%s0 + $0x8] sm:$0xff]
    %v69 = vpack.c.bf16 %v68, %v67
    %v70 = vld [vmem:[#allocation5] sm:$0xf]
    %v71 = vld [vmem:[#allocation5 + $0x4] sm:$0xf]
    %v72 = vld [vmem:[#allocation5 + $0x8] sm:$0xf]
    %v73 = vld [vmem:[#allocation5 + $0xc] sm:$0xf]
    %v74 = vld [vmem:[#allocation5 + $0x10] sm:$0xf]
    %v75 = vld [vmem:[#allocation5 + $0x14] sm:$0xf]
    %v76 = vld [vmem:[#allocation5 + $0x18] sm:$0xf]
    %v77 = vld [vmem:[#allocation5 + $0x1c] sm:$0xf]
    %v78 = vld [vmem:[#allocation5 + $0x20] sm:$0xf]
    %v79 = vld [vmem:[#allocation5 + $0x24] sm:$0xf]
    %v80 = vld [vmem:[#allocation5 + $0x28] sm:$0xf]
    %v81 = vld [vmem:[#allocation5 + $0x2c] sm:$0xf]
    %v82 = vld [vmem:[#allocation5 + $0x30] sm:$0xf]
    %v83 = vld [vmem:[#allocation5 + $0x34] sm:$0xf]
    %v84 = vld [vmem:[#allocation5 + $0x38] sm:$0xf]
    %v85 = vld [vmem:[#allocation5 + $0x3c] sm:$0xf]
    %v86 = vld [vmem:[%s4] sm:$0x1]
    %v88 = vlaneseq
    %v89 = vshrl.u32 %v88, 7
    %v90 = vsub.s32 0, %v89
    %v91 = vrot.slane %v86, %v90
    %v109 = vunpack.c.l.b16 %v70
    %v110 = vunpack.c.l.b16 %v71
    %v111 = vunpack.c.l.b16 %v72
    %v112 = vunpack.c.l.b16 %v73
    %v113 = vunpack.c.l.b16 %v74
    %v114 = vunpack.c.l.b16 %v75
    %v115 = vunpack.c.l.b16 %v76
    %v116 = vunpack.c.l.b16 %v77
    %v117 = vunpack.c.l.b16 %v78
    %v118 = vunpack.c.l.b16 %v79
    %v119 = vunpack.c.l.b16 %v80
    %v120 = vunpack.c.l.b16 %v81
    %v121 = vunpack.c.l.b16 %v82
    %v122 = vunpack.c.l.b16 %v83
    %v123 = vunpack.c.l.b16 %v84
    %v124 = vunpack.c.l.b16 %v85
    %v125 = vpack.c.b16 %v110, %v109
    %v126 = vpack.c.b16 %v112, %v111
    %v127 = vpack.c.b16 %v114, %v113
    %v128 = vpack.c.b16 %v116, %v115
    %v129 = vpack.c.b16 %v118, %v117
    %v130 = vpack.c.b16 %v120, %v119
    %v131 = vpack.c.b16 %v122, %v121
    %v132 = vpack.c.b16 %v124, %v123
    %141 = vmatprep.subr.bf16.mxu0 0
    %142 = vmatpush1.bf16.msra.mxu0 %v125
    %143 = vmatprep.subr.bf16.mxu0 0
    %144 = vmatpush1.bf16.msra.mxu0 %v126
    %145 = vmatprep.subr.bf16.mxu0 0
    %146 = vmatpush1.bf16.msra.mxu0 %v127
    %147 = vmatprep.subr.bf16.mxu0 0
    %148 = vmatpush1.bf16.msra.mxu0 %v128
    %149 = vmatprep.subr.bf16.mxu0 0
    %150 = vmatpush1.bf16.msra.mxu0 %v129
    %151 = vmatprep.subr.bf16.mxu0 0
    %152 = vmatpush1.bf16.msra.mxu0 %v130
    %153 = vmatprep.subr.bf16.mxu0 0
    %154 = vmatpush1.bf16.msra.mxu0 %v131
    %155 = vmatprep.subr.bf16.mxu0 0
    %156 = vmatpush1.bf16.msra.mxu0 %v132
    %157 = vmatprep.subr.bf16.mxu0 0
    %158 = vmatpush1.bf16.msra.mxu0 0
    %159 = vmatprep.subr.bf16.mxu0 0
    %160 = vmatpush1.bf16.msra.mxu0 0
    %161 = vmatprep.subr.bf16.mxu0 0
    %162 = vmatpush1.bf16.msra.mxu0 0
    %163 = vmatprep.subr.bf16.mxu0 0
    %164 = vmatpush1.bf16.msra.mxu0 0
    %165 = vmatprep.subr.bf16.mxu0 0
    %166 = vmatpush1.bf16.msra.mxu0 0
    %167 = vmatprep.subr.bf16.mxu0 0
    %168 = vmatpush1.bf16.msra.mxu0 0
    %169 = vmatprep.subr.bf16.mxu0 0
    %170 = vmatpush1.bf16.msra.mxu0 0
    %171 = vmatprep.subr.bf16.mxu0 0
    %172 = vmatpush1.bf16.msra.mxu0 0
    %173 = vmatprep.mubr.bf16.mxu0 0
    %174 = vmatmul.mubr.bf16.gmra.mrb[0].mxu0 %v69
    %v175 = vpop.f32.mrb[0].mxu0
    %v176 = vadd.f32 %v91, %v175
    %v177 = vpop.f32.mrb[0].mxu0
    %v178 = vpop.f32.mrb[0].mxu0
    %v179 = vadd.f32 %v91, %v178
    %v180 = vpop.f32.mrb[0].mxu0
    %181 = vdwg.mxu0
    %vm182 = vcmp.ge.f32.partialorder %v176, 0.0
    %vm183 = vcmp.ge.f32.partialorder %v179, 0.0
    %v184 = vmul.f32 %v176, 1.4142135
    %v185 = vmul.f32 %v179, 1.4142135
    %v186 = vmul.f32 %v176, 0.28284273
    %v187 = vmul.f32 %v179, 0.28284273
    %v188 = vsel %vm182, %v184, %v186
    %v189 = vsel %vm183, %v185, %v187
    %v190 = vpack.c.bf16 %v189, %v188
    %s191 = scalar_lea.vmem [#allocation5], 64
    %v192 = vld [vmem:[%s191] sm:$0xf]
    %v193 = vld [vmem:[%s191 + $0x4] sm:$0xf]
    %v194 = vld [vmem:[%s191 + $0x8] sm:$0xf]
    %v195 = vld [vmem:[%s191 + $0xc] sm:$0xf]
    %v196 = vld [vmem:[%s191 + $0x10] sm:$0xf]
    %v197 = vld [vmem:[%s191 + $0x14] sm:$0xf]
    %v198 = vld [vmem:[%s191 + $0x18] sm:$0xf]
    %v199 = vld [vmem:[%s191 + $0x1c] sm:$0xf]
    %v200 = vld [vmem:[%s191 + $0x20] sm:$0xf]
    %v201 = vld [vmem:[%s191 + $0x24] sm:$0xf]
    %v202 = vld [vmem:[%s191 + $0x28] sm:$0xf]
    %v203 = vld [vmem:[%s191 + $0x2c] sm:$0xf]
    %v204 = vld [vmem:[%s191 + $0x30] sm:$0xf]
    %v205 = vld [vmem:[%s191 + $0x34] sm:$0xf]
    %v206 = vld [vmem:[%s191 + $0x38] sm:$0xf]
    %v207 = vld [vmem:[%s191 + $0x3c] sm:$0xf]
    %s208 = scalar_lea.vmem %s4, 1
    %v209 = vld [vmem:[%s208] sm:$0x1]
    %v211 = vlaneseq
    %v212 = vshrl.u32 %v211, 7
    %v213 = vsub.s32 0, %v212
    %v214 = vrot.slane %v209, %v213
    %v232 = vunpack.c.l.b16 %v192
    %v233 = vunpack.c.l.b16 %v193
    %v234 = vunpack.c.l.b16 %v194
    %v235 = vunpack.c.l.b16 %v195
    %v236 = vunpack.c.l.b16 %v196
    %v237 = vunpack.c.l.b16 %v197
    %v238 = vunpack.c.l.b16 %v198
    %v239 = vunpack.c.l.b16 %v199
    %v240 = vunpack.c.l.b16 %v200
    %v241 = vunpack.c.l.b16 %v201
    %v242 = vunpack.c.l.b16 %v202
    %v243 = vunpack.c.l.b16 %v203
    %v244 = vunpack.c.l.b16 %v204
    %v245 = vunpack.c.l.b16 %v205
    %v246 = vunpack.c.l.b16 %v206
    %v247 = vunpack.c.l.b16 %v207
    %v248 = vpack.c.b16 %v233, %v232
    %v249 = vpack.c.b16 %v235, %v234
    %v250 = vpack.c.b16 %v237, %v236
    %v251 = vpack.c.b16 %v239, %v238
    %v252 = vpack.c.b16 %v241, %v240
    %v253 = vpack.c.b16 %v243, %v242
    %v254 = vpack.c.b16 %v245, %v244
    %v255 = vpack.c.b16 %v247, %v246
    %264 = vmatprep.subr.bf16.mxu0 0
    %265 = vmatpush1.bf16.msra.mxu0 %v248
    %266 = vmatprep.subr.bf16.mxu0 0
    %267 = vmatpush1.bf16.msra.mxu0 %v249
    %268 = vmatprep.subr.bf16.mxu0 0
    %269 = vmatpush1.bf16.msra.mxu0 %v250
    %270 = vmatprep.subr.bf16.mxu0 0
    %271 = vmatpush1.bf16.msra.mxu0 %v251
    %272 = vmatprep.subr.bf16.mxu0 0
    %273 = vmatpush1.bf16.msra.mxu0 %v252
    %274 = vmatprep.subr.bf16.mxu0 0
    %275 = vmatpush1.bf16.msra.mxu0 %v253
    %276 = vmatprep.subr.bf16.mxu0 0
    %277 = vmatpush1.bf16.msra.mxu0 %v254
    %278 = vmatprep.subr.bf16.mxu0 0
    %279 = vmatpush1.bf16.msra.mxu0 %v255
    %280 = vmatprep.subr.bf16.mxu0 0
    %281 = vmatpush1.bf16.msra.mxu0 0
    %282 = vmatprep.subr.bf16.mxu0 0
    %283 = vmatpush1.bf16.msra.mxu0 0
    %284 = vmatprep.subr.bf16.mxu0 0
    %285 = vmatpush1.bf16.msra.mxu0 0
    %286 = vmatprep.subr.bf16.mxu0 0
    %287 = vmatpush1.bf16.msra.mxu0 0
    %288 = vmatprep.subr.bf16.mxu0 0
    %289 = vmatpush1.bf16.msra.mxu0 0
    %290 = vmatprep.subr.bf16.mxu0 0
    %291 = vmatpush1.bf16.msra.mxu0 0
    %292 = vmatprep.subr.bf16.mxu0 0
    %293 = vmatpush1.bf16.msra.mxu0 0
    %294 = vmatprep.subr.bf16.mxu0 0
    %295 = vmatpush1.bf16.msra.mxu0 0
    %296 = vmatprep.mubr.bf16.mxu0 0
    %297 = vmatmul.mubr.bf16.gmra.mrb[0].mxu0 %v190
    %v298 = vpop.f32.mrb[0].mxu0
    %v299 = vadd.f32 %v214, %v298
    %v300 = vpop.f32.mrb[0].mxu0
    %v301 = vpop.f32.mrb[0].mxu0
    %v302 = vadd.f32 %v214, %v301
    %v303 = vpop.f32.mrb[0].mxu0
    %304 = vdwg.mxu0
    %vm305 = vcmp.ge.f32.partialorder %v299, 0.0
    %vm306 = vcmp.ge.f32.partialorder %v302, 0.0
    %v307 = vmul.f32 %v299, 1.4142135
    %v308 = vmul.f32 %v302, 1.4142135
    %v309 = vmul.f32 %v299, 0.28284273
    %v310 = vmul.f32 %v302, 0.28284273
    %v311 = vsel %vm305, %v307, %v309
    %v312 = vsel %vm306, %v308, %v310
    %v313 = vpack.c.bf16 %v312, %v311
    %s314 = scalar_lea.vmem [#allocation5], 128
    %v315 = vld [vmem:[%s314] sm:$0xf]
    %v316 = vld [vmem:[%s314 + $0x4] sm:$0xf]
    %v317 = vld [vmem:[%s314 + $0x8] sm:$0xf]
    %v318 = vld [vmem:[%s314 + $0xc] sm:$0xf]
    %v319 = vld [vmem:[%s314 + $0x10] sm:$0xf]
    %v320 = vld [vmem:[%s314 + $0x14] sm:$0xf]
    %v321 = vld [vmem:[%s314 + $0x18] sm:$0xf]
    %v322 = vld [vmem:[%s314 + $0x1c] sm:$0xf]
    %v323 = vld [vmem:[%s314 + $0x20] sm:$0xf]
    %v324 = vld [vmem:[%s314 + $0x24] sm:$0xf]
    %v325 = vld [vmem:[%s314 + $0x28] sm:$0xf]
    %v326 = vld [vmem:[%s314 + $0x2c] sm:$0xf]
    %v327 = vld [vmem:[%s314 + $0x30] sm:$0xf]
    %v328 = vld [vmem:[%s314 + $0x34] sm:$0xf]
    %v329 = vld [vmem:[%s314 + $0x38] sm:$0xf]
    %v330 = vld [vmem:[%s314 + $0x3c] sm:$0xf]
    %s331 = scalar_lea.vmem %s4, 2
    %v332 = vld [vmem:[%s331] sm:$0x1]
    %v334 = vlaneseq
    %v335 = vshrl.u32 %v334, 7
    %v336 = vsub.s32 0, %v335
    %v337 = vrot.slane %v332, %v336
    %v355 = vunpack.c.l.b16 %v315
    %v356 = vunpack.c.l.b16 %v316
    %v357 = vunpack.c.l.b16 %v317
    %v358 = vunpack.c.l.b16 %v318
    %v359 = vunpack.c.l.b16 %v319
    %v360 = vunpack.c.l.b16 %v320
    %v361 = vunpack.c.l.b16 %v321
    %v362 = vunpack.c.l.b16 %v322
    %v363 = vunpack.c.l.b16 %v323
    %v364 = vunpack.c.l.b16 %v324
    %v365 = vunpack.c.l.b16 %v325
    %v366 = vunpack.c.l.b16 %v326
    %v367 = vunpack.c.l.b16 %v327
    %v368 = vunpack.c.l.b16 %v328
    %v369 = vunpack.c.l.b16 %v329
    %v370 = vunpack.c.l.b16 %v330
    %v371 = vpack.c.b16 %v356, %v355
    %v372 = vpack.c.b16 %v358, %v357
    %v373 = vpack.c.b16 %v360, %v359
    %v374 = vpack.c.b16 %v362, %v361
    %v375 = vpack.c.b16 %v364, %v363
    %v376 = vpack.c.b16 %v366, %v365
    %v377 = vpack.c.b16 %v368, %v367
    %v378 = vpack.c.b16 %v370, %v369
    %387 = vmatprep.subr.bf16.mxu0 0
    %388 = vmatpush1.bf16.msra.mxu0 %v371
    %389 = vmatprep.subr.bf16.mxu0 0
    %390 = vmatpush1.bf16.msra.mxu0 %v372
    %391 = vmatprep.subr.bf16.mxu0 0
    %392 = vmatpush1.bf16.msra.mxu0 %v373
    %393 = vmatprep.subr.bf16.mxu0 0
    %394 = vmatpush1.bf16.msra.mxu0 %v374
    %395 = vmatprep.subr.bf16.mxu0 0
    %396 = vmatpush1.bf16.msra.mxu0 %v375
    %397 = vmatprep.subr.bf16.mxu0 0
    %398 = vmatpush1.bf16.msra.mxu0 %v376
    %399 = vmatprep.subr.bf16.mxu0 0
    %400 = vmatpush1.bf16.msra.mxu0 %v377
    %401 = vmatprep.subr.bf16.mxu0 0
    %402 = vmatpush1.bf16.msra.mxu0 %v378
    %403 = vmatprep.subr.bf16.mxu0 0
    %404 = vmatpush1.bf16.msra.mxu0 0
    %405 = vmatprep.subr.bf16.mxu0 0
    %406 = vmatpush1.bf16.msra.mxu0 0
    %407 = vmatprep.subr.bf16.mxu0 0
    %408 = vmatpush1.bf16.msra.mxu0 0
    %409 = vmatprep.subr.bf16.mxu0 0
    %410 = vmatpush1.bf16.msra.mxu0 0
    %411 = vmatprep.subr.bf16.mxu0 0
    %412 = vmatpush1.bf16.msra.mxu0 0
    %413 = vmatprep.subr.bf16.mxu0 0
    %414 = vmatpush1.bf16.msra.mxu0 0
    %415 = vmatprep.subr.bf16.mxu0 0
    %416 = vmatpush1.bf16.msra.mxu0 0
    %417 = vmatprep.subr.bf16.mxu0 0
    %418 = vmatpush1.bf16.msra.mxu0 0
    %419 = vmatprep.mubr.bf16.mxu0 0
    %420 = vmatmul.mubr.bf16.gmra.mrb[0].mxu0 %v313
    %v421 = vpop.f32.mrb[0].mxu0
    %v422 = vadd.f32 %v337, %v421
    %v423 = vpop.f32.mrb[0].mxu0
    %v424 = vpop.f32.mrb[0].mxu0
    %v425 = vadd.f32 %v337, %v424
    %v426 = vpop.f32.mrb[0].mxu0
    %427 = vdwg.mxu0
    %vm428 = vcmp.ge.f32.partialorder %v422, 0.0
    %vm429 = vcmp.ge.f32.partialorder %v425, 0.0
    %v430 = vmul.f32 %v422, 1.4142135
    %v431 = vmul.f32 %v425, 1.4142135
    %v432 = vmul.f32 %v422, 0.28284273
    %v433 = vmul.f32 %v425, 0.28284273
    %v434 = vsel %vm428, %v430, %v432
    %v435 = vsel %vm429, %v431, %v433
    %v436 = vpack.c.bf16 %v435, %v434
    %s437 = scalar_lea.vmem [#allocation5], 192
    %v438 = vld [vmem:[%s437] sm:$0xf]
    %v439 = vld [vmem:[%s437 + $0x4] sm:$0xf]
    %v440 = vld [vmem:[%s437 + $0x8] sm:$0xf]
    %v441 = vld [vmem:[%s437 + $0xc] sm:$0xf]
    %v442 = vld [vmem:[%s437 + $0x10] sm:$0xf]
    %v443 = vld [vmem:[%s437 + $0x14] sm:$0xf]
    %v444 = vld [vmem:[%s437 + $0x18] sm:$0xf]
    %v445 = vld [vmem:[%s437 + $0x1c] sm:$0xf]
    %v446 = vld [vmem:[%s437 + $0x20] sm:$0xf]
    %v447 = vld [vmem:[%s437 + $0x24] sm:$0xf]
    %v448 = vld [vmem:[%s437 + $0x28] sm:$0xf]
    %v449 = vld [vmem:[%s437 + $0x2c] sm:$0xf]
    %v450 = vld [vmem:[%s437 + $0x30] sm:$0xf]
    %v451 = vld [vmem:[%s437 + $0x34] sm:$0xf]
    %v452 = vld [vmem:[%s437 + $0x38] sm:$0xf]
    %v453 = vld [vmem:[%s437 + $0x3c] sm:$0xf]
    %s454 = scalar_lea.vmem %s4, 3
    %v455 = vld [vmem:[%s454] sm:$0x1]
    %v457 = vlaneseq
    %v458 = vshrl.u32 %v457, 7
    %v459 = vsub.s32 0, %v458
    %v460 = vrot.slane %v455, %v459
    %v478 = vunpack.c.l.b16 %v438
    %v479 = vunpack.c.l.b16 %v439
    %v480 = vunpack.c.l.b16 %v440
    %v481 = vunpack.c.l.b16 %v441
    %v482 = vunpack.c.l.b16 %v442
    %v483 = vunpack.c.l.b16 %v443
    %v484 = vunpack.c.l.b16 %v444
    %v485 = vunpack.c.l.b16 %v445
    %v486 = vunpack.c.l.b16 %v446
    %v487 = vunpack.c.l.b16 %v447
    %v488 = vunpack.c.l.b16 %v448
    %v489 = vunpack.c.l.b16 %v449
    %v490 = vunpack.c.l.b16 %v450
    %v491 = vunpack.c.l.b16 %v451
    %v492 = vunpack.c.l.b16 %v452
    %v493 = vunpack.c.l.b16 %v453
    %v494 = vpack.c.b16 %v479, %v478
    %v495 = vpack.c.b16 %v481, %v480
    %v496 = vpack.c.b16 %v483, %v482
    %v497 = vpack.c.b16 %v485, %v484
    %v498 = vpack.c.b16 %v487, %v486
    %v499 = vpack.c.b16 %v489, %v488
    %v500 = vpack.c.b16 %v491, %v490
    %v501 = vpack.c.b16 %v493, %v492
    %510 = vmatprep.subr.bf16.mxu0 0
    %511 = vmatpush1.bf16.msra.mxu0 %v494
    %512 = vmatprep.subr.bf16.mxu0 0
    %513 = vmatpush1.bf16.msra.mxu0 %v495
    %514 = vmatprep.subr.bf16.mxu0 0
    %515 = vmatpush1.bf16.msra.mxu0 %v496
    %516 = vmatprep.subr.bf16.mxu0 0
    %517 = vmatpush1.bf16.msra.mxu0 %v497
    %518 = vmatprep.subr.bf16.mxu0 0
    %519 = vmatpush1.bf16.msra.mxu0 %v498
    %520 = vmatprep.subr.bf16.mxu0 0
    %521 = vmatpush1.bf16.msra.mxu0 %v499
    %522 = vmatprep.subr.bf16.mxu0 0
    %523 = vmatpush1.bf16.msra.mxu0 %v500
    %524 = vmatprep.subr.bf16.mxu0 0
    %525 = vmatpush1.bf16.msra.mxu0 %v501
    %526 = vmatprep.subr.bf16.mxu0 0
    %527 = vmatpush1.bf16.msra.mxu0 0
    %528 = vmatprep.subr.bf16.mxu0 0
    %529 = vmatpush1.bf16.msra.mxu0 0
    %530 = vmatprep.subr.bf16.mxu0 0
    %531 = vmatpush1.bf16.msra.mxu0 0
    %532 = vmatprep.subr.bf16.mxu0 0
    %533 = vmatpush1.bf16.msra.mxu0 0
    %534 = vmatprep.subr.bf16.mxu0 0
    %535 = vmatpush1.bf16.msra.mxu0 0
    %536 = vmatprep.subr.bf16.mxu0 0
    %537 = vmatpush1.bf16.msra.mxu0 0
    %538 = vmatprep.subr.bf16.mxu0 0
    %539 = vmatpush1.bf16.msra.mxu0 0
    %540 = vmatprep.subr.bf16.mxu0 0
    %541 = vmatpush1.bf16.msra.mxu0 0
    %542 = vmatprep.mubr.bf16.mxu0 0
    %543 = vmatmul.mubr.bf16.gmra.mrb[0].mxu0 %v436
    %v544 = vpop.f32.mrb[0].mxu0
    %v545 = vadd.f32 %v460, %v544
    %v546 = vpop.f32.mrb[0].mxu0
    %v547 = vpop.f32.mrb[0].mxu0
    %v548 = vadd.f32 %v460, %v547
    %v549 = vpop.f32.mrb[0].mxu0
    %550 = vdwg.mxu0
    %vm551 = vcmp.ge.f32.partialorder %v545, 0.0
    %vm552 = vcmp.ge.f32.partialorder %v548, 0.0
    %v553 = vmul.f32 %v545, 1.4142135
    %v554 = vmul.f32 %v548, 1.4142135
    %v555 = vmul.f32 %v545, 0.28284273
    %v556 = vmul.f32 %v548, 0.28284273
    %v557 = vsel %vm551, %v553, %v555
    %v558 = vsel %vm552, %v554, %v556
    %v559 = vld [vmem:[%s1] sm:$0xff]
    %v560 = vld [vmem:[%s1 + $0x8] sm:$0xff]
    %v561 = vld [vmem:[#allocation2] sm:$0x1]
    %563 = vset.pattern.permute.xlu0 0
    %564 = vperm.xlu0 %563, %v559
    %v565 = vpop.permute.xlu0 %564
    %568 = vset.pattern.permute.xlu0 0
    %569 = vperm.xlu0 %568, %v560
    %v570 = vpop.permute.xlu0 %569
    %v573 = vlaneseq
    %v574 = vshrl.u32 %v573, 7
    %v575 = vsub.s32 0, %v574
    %v576 = vrot.slane %v561, %v575
    %v578 = vmul.f32 %v565, %v576
    %v579 = vmul.f32 %v570, %v576
    %v580 = vadd.f32 %v557, %v578
    %v581 = vadd.f32 %v558, %v579
    %v582 = vpack.c.bf16 %v581, %v580
    %v583 = vld [vmem:[#allocation7] sm:$0xf]
    %v584 = vld [vmem:[#allocation7 + $0x4] sm:$0xf]
    %v585 = vld [vmem:[#allocation7 + $0x8] sm:$0xf]
    %v586 = vld [vmem:[#allocation7 + $0xc] sm:$0xf]
    %v587 = vld [vmem:[#allocation7 + $0x10] sm:$0xf]
    %v588 = vld [vmem:[#allocation7 + $0x14] sm:$0xf]
    %v589 = vld [vmem:[#allocation7 + $0x18] sm:$0xf]
    %v590 = vld [vmem:[#allocation7 + $0x1c] sm:$0xf]
    %v591 = vld [vmem:[#allocation7 + $0x20] sm:$0xf]
    %v592 = vld [vmem:[#allocation7 + $0x24] sm:$0xf]
    %v593 = vld [vmem:[#allocation7 + $0x28] sm:$0xf]
    %v594 = vld [vmem:[#allocation7 + $0x2c] sm:$0xf]
    %v595 = vld [vmem:[#allocation7 + $0x30] sm:$0xf]
    %v596 = vld [vmem:[#allocation7 + $0x34] sm:$0xf]
    %v597 = vld [vmem:[#allocation7 + $0x38] sm:$0xf]
    %v598 = vld [vmem:[#allocation7 + $0x3c] sm:$0xf]
    %v599 = vld [vmem:[%s6] sm:$0x1]
    %v601 = vlaneseq
    %v602 = vshrl.u32 %v601, 7
    %v603 = vsub.s32 0, %v602
    %v604 = vrot.slane %v599, %v603
    %v622 = vunpack.c.l.b16 %v583
    %v623 = vunpack.c.l.b16 %v584
    %v624 = vunpack.c.l.b16 %v585
    %v625 = vunpack.c.l.b16 %v586
    %v626 = vunpack.c.l.b16 %v587
    %v627 = vunpack.c.l.b16 %v588
    %v628 = vunpack.c.l.b16 %v589
    %v629 = vunpack.c.l.b16 %v590
    %v630 = vunpack.c.l.b16 %v591
    %v631 = vunpack.c.l.b16 %v592
    %v632 = vunpack.c.l.b16 %v593
    %v633 = vunpack.c.l.b16 %v594
    %v634 = vunpack.c.l.b16 %v595
    %v635 = vunpack.c.l.b16 %v596
    %v636 = vunpack.c.l.b16 %v597
    %v637 = vunpack.c.l.b16 %v598
    %v638 = vpack.c.b16 %v623, %v622
    %v639 = vpack.c.b16 %v625, %v624
    %v640 = vpack.c.b16 %v627, %v626
    %v641 = vpack.c.b16 %v629, %v628
    %v642 = vpack.c.b16 %v631, %v630
    %v643 = vpack.c.b16 %v633, %v632
    %v644 = vpack.c.b16 %v635, %v634
    %v645 = vpack.c.b16 %v637, %v636
    %654 = vmatprep.subr.bf16.mxu0 0
    %655 = vmatpush1.bf16.msra.mxu0 %v638
    %656 = vmatprep.subr.bf16.mxu0 0
    %657 = vmatpush1.bf16.msra.mxu0 %v639
    %658 = vmatprep.subr.bf16.mxu0 0
    %659 = vmatpush1.bf16.msra.mxu0 %v640
    %660 = vmatprep.subr.bf16.mxu0 0
    %661 = vmatpush1.bf16.msra.mxu0 %v641
    %662 = vmatprep.subr.bf16.mxu0 0
    %663 = vmatpush1.bf16.msra.mxu0 %v642
    %664 = vmatprep.subr.bf16.mxu0 0
    %665 = vmatpush1.bf16.msra.mxu0 %v643
    %666 = vmatprep.subr.bf16.mxu0 0
    %667 = vmatpush1.bf16.msra.mxu0 %v644
    %668 = vmatprep.subr.bf16.mxu0 0
    %669 = vmatpush1.bf16.msra.mxu0 %v645
    %670 = vmatprep.subr.bf16.mxu0 0
    %671 = vmatpush1.bf16.msra.mxu0 0
    %672 = vmatprep.subr.bf16.mxu0 0
    %673 = vmatpush1.bf16.msra.mxu0 0
    %674 = vmatprep.subr.bf16.mxu0 0
    %675 = vmatpush1.bf16.msra.mxu0 0
    %676 = vmatprep.subr.bf16.mxu0 0
    %677 = vmatpush1.bf16.msra.mxu0 0
    %678 = vmatprep.subr.bf16.mxu0 0
    %679 = vmatpush1.bf16.msra.mxu0 0
    %680 = vmatprep.subr.bf16.mxu0 0
    %681 = vmatpush1.bf16.msra.mxu0 0
    %682 = vmatprep.subr.bf16.mxu0 0
    %683 = vmatpush1.bf16.msra.mxu0 0
    %684 = vmatprep.subr.bf16.mxu0 0
    %685 = vmatpush1.bf16.msra.mxu0 0
    %686 = vmatprep.mubr.bf16.mxu0 0
    %687 = vmatmul.mubr.bf16.gmra.mrb[0].mxu0 %v582
    %v688 = vpop.f32.mrb[0].mxu0
    %v689 = vadd.f32 %v604, %v688
    %v690 = vpop.f32.mrb[0].mxu0
    %v691 = vpop.f32.mrb[0].mxu0
    %v692 = vadd.f32 %v604, %v691
    %v693 = vpop.f32.mrb[0].mxu0
    %694 = vdwg.mxu0
    %vm695 = vcmp.ge.f32.partialorder %v689, 0.0
    %vm696 = vcmp.ge.f32.partialorder %v692, 0.0
    %v697 = vmul.f32 %v689, 1.4142135
    %v698 = vmul.f32 %v692, 1.4142135
    %v699 = vmul.f32 %v689, 0.28284273
    %v700 = vmul.f32 %v692, 0.28284273
    %v701 = vsel %vm695, %v697, %v699
    %v702 = vsel %vm696, %v698, %v700
    %v703 = vpack.c.bf16 %v702, %v701
    %s704 = scalar_lea.vmem [#allocation7], 64
    %v705 = vld [vmem:[%s704] sm:$0xf]
    %v706 = vld [vmem:[%s704 + $0x4] sm:$0xf]
    %v707 = vld [vmem:[%s704 + $0x8] sm:$0xf]
    %v708 = vld [vmem:[%s704 + $0xc] sm:$0xf]
    %v709 = vld [vmem:[%s704 + $0x10] sm:$0xf]
    %v710 = vld [vmem:[%s704 + $0x14] sm:$0xf]
    %v711 = vld [vmem:[%s704 + $0x18] sm:$0xf]
    %v712 = vld [vmem:[%s704 + $0x1c] sm:$0xf]
    %v713 = vld [vmem:[%s704 + $0x20] sm:$0xf]
    %v714 = vld [vmem:[%s704 + $0x24] sm:$0xf]
    %v715 = vld [vmem:[%s704 + $0x28] sm:$0xf]
    %v716 = vld [vmem:[%s704 + $0x2c] sm:$0xf]
    %v717 = vld [vmem:[%s704 + $0x30] sm:$0xf]
    %v718 = vld [vmem:[%s704 + $0x34] sm:$0xf]
    %v719 = vld [vmem:[%s704 + $0x38] sm:$0xf]
    %v720 = vld [vmem:[%s704 + $0x3c] sm:$0xf]
    %s721 = scalar_lea.vmem %s6, 1
    %v722 = vld [vmem:[%s721] sm:$0x1]
    %v724 = vlaneseq
    %v725 = vshrl.u32 %v724, 7
    %v726 = vsub.s32 0, %v725
    %v727 = vrot.slane %v722, %v726
    %v745 = vunpack.c.l.b16 %v705
    %v746 = vunpack.c.l.b16 %v706
    %v747 = vunpack.c.l.b16 %v707
    %v748 = vunpack.c.l.b16 %v708
    %v749 = vunpack.c.l.b16 %v709
    %v750 = vunpack.c.l.b16 %v710
    %v751 = vunpack.c.l.b16 %v711
    %v752 = vunpack.c.l.b16 %v712
    %v753 = vunpack.c.l.b16 %v713
    %v754 = vunpack.c.l.b16 %v714
    %v755 = vunpack.c.l.b16 %v715
    %v756 = vunpack.c.l.b16 %v716
    %v757 = vunpack.c.l.b16 %v717
    %v758 = vunpack.c.l.b16 %v718
    %v759 = vunpack.c.l.b16 %v719
    %v760 = vunpack.c.l.b16 %v720
    %v761 = vpack.c.b16 %v746, %v745
    %v762 = vpack.c.b16 %v748, %v747
    %v763 = vpack.c.b16 %v750, %v749
    %v764 = vpack.c.b16 %v752, %v751
    %v765 = vpack.c.b16 %v754, %v753
    %v766 = vpack.c.b16 %v756, %v755
    %v767 = vpack.c.b16 %v758, %v757
    %v768 = vpack.c.b16 %v760, %v759
    %777 = vmatprep.subr.bf16.mxu0 0
    %778 = vmatpush1.bf16.msra.mxu0 %v761
    %779 = vmatprep.subr.bf16.mxu0 0
    %780 = vmatpush1.bf16.msra.mxu0 %v762
    %781 = vmatprep.subr.bf16.mxu0 0
    %782 = vmatpush1.bf16.msra.mxu0 %v763
    %783 = vmatprep.subr.bf16.mxu0 0
    %784 = vmatpush1.bf16.msra.mxu0 %v764
    %785 = vmatprep.subr.bf16.mxu0 0
    %786 = vmatpush1.bf16.msra.mxu0 %v765
    %787 = vmatprep.subr.bf16.mxu0 0
    %788 = vmatpush1.bf16.msra.mxu0 %v766
    %789 = vmatprep.subr.bf16.mxu0 0
    %790 = vmatpush1.bf16.msra.mxu0 %v767
    %791 = vmatprep.subr.bf16.mxu0 0
    %792 = vmatpush1.bf16.msra.mxu0 %v768
    %793 = vmatprep.subr.bf16.mxu0 0
    %794 = vmatpush1.bf16.msra.mxu0 0
    %795 = vmatprep.subr.bf16.mxu0 0
    %796 = vmatpush1.bf16.msra.mxu0 0
    %797 = vmatprep.subr.bf16.mxu0 0
    %798 = vmatpush1.bf16.msra.mxu0 0
    %799 = vmatprep.subr.bf16.mxu0 0
    %800 = vmatpush1.bf16.msra.mxu0 0
    %801 = vmatprep.subr.bf16.mxu0 0
    %802 = vmatpush1.bf16.msra.mxu0 0
    %803 = vmatprep.subr.bf16.mxu0 0
    %804 = vmatpush1.bf16.msra.mxu0 0
    %805 = vmatprep.subr.bf16.mxu0 0
    %806 = vmatpush1.bf16.msra.mxu0 0
    %807 = vmatprep.subr.bf16.mxu0 0
    %808 = vmatpush1.bf16.msra.mxu0 0
    %809 = vmatprep.mubr.bf16.mxu0 0
    %810 = vmatmul.mubr.bf16.gmra.mrb[0].mxu0 %v703
    %v811 = vpop.f32.mrb[0].mxu0
    %v812 = vadd.f32 %v727, %v811
    %v813 = vpop.f32.mrb[0].mxu0
    %v814 = vpop.f32.mrb[0].mxu0
    %v815 = vadd.f32 %v727, %v814
    %v816 = vpop.f32.mrb[0].mxu0
    %817 = vdwg.mxu0
    %vm818 = vcmp.ge.f32.partialorder %v812, 0.0
    %vm819 = vcmp.ge.f32.partialorder %v815, 0.0
    %v820 = vmul.f32 %v812, 1.4142135
    %v821 = vmul.f32 %v815, 1.4142135
    %v822 = vmul.f32 %v812, 0.28284273
    %v823 = vmul.f32 %v815, 0.28284273
    %v824 = vsel %vm818, %v820, %v822
    %v825 = vsel %vm819, %v821, %v823
    %v826 = vpack.c.bf16 %v825, %v824
    %s827 = scalar_lea.vmem [#allocation7], 128
    %v828 = vld [vmem:[%s827] sm:$0xf]
    %v829 = vld [vmem:[%s827 + $0x4] sm:$0xf]
    %v830 = vld [vmem:[%s827 + $0x8] sm:$0xf]
    %v831 = vld [vmem:[%s827 + $0xc] sm:$0xf]
    %v832 = vld [vmem:[%s827 + $0x10] sm:$0xf]
    %v833 = vld [vmem:[%s827 + $0x14] sm:$0xf]
    %v834 = vld [vmem:[%s827 + $0x18] sm:$0xf]
    %v835 = vld [vmem:[%s827 + $0x1c] sm:$0xf]
    %v836 = vld [vmem:[%s827 + $0x20] sm:$0xf]
    %v837 = vld [vmem:[%s827 + $0x24] sm:$0xf]
    %v838 = vld [vmem:[%s827 + $0x28] sm:$0xf]
    %v839 = vld [vmem:[%s827 + $0x2c] sm:$0xf]
    %v840 = vld [vmem:[%s827 + $0x30] sm:$0xf]
    %v841 = vld [vmem:[%s827 + $0x34] sm:$0xf]
    %v842 = vld [vmem:[%s827 + $0x38] sm:$0xf]
    %v843 = vld [vmem:[%s827 + $0x3c] sm:$0xf]
    %s844 = scalar_lea.vmem %s6, 2
    %v845 = vld [vmem:[%s844] sm:$0x1]
    %v847 = vlaneseq
    %v848 = vshrl.u32 %v847, 7
    %v849 = vsub.s32 0, %v848
    %v850 = vrot.slane %v845, %v849
    %v868 = vunpack.c.l.b16 %v828
    %v869 = vunpack.c.l.b16 %v829
    %v870 = vunpack.c.l.b16 %v830
    %v871 = vunpack.c.l.b16 %v831
    %v872 = vunpack.c.l.b16 %v832
    %v873 = vunpack.c.l.b16 %v833
    %v874 = vunpack.c.l.b16 %v834
    %v875 = vunpack.c.l.b16 %v835
    %v876 = vunpack.c.l.b16 %v836
    %v877 = vunpack.c.l.b16 %v837
    %v878 = vunpack.c.l.b16 %v838
    %v879 = vunpack.c.l.b16 %v839
    %v880 = vunpack.c.l.b16 %v840
    %v881 = vunpack.c.l.b16 %v841
    %v882 = vunpack.c.l.b16 %v842
    %v883 = vunpack.c.l.b16 %v843
    %v884 = vpack.c.b16 %v869, %v868
    %v885 = vpack.c.b16 %v871, %v870
    %v886 = vpack.c.b16 %v873, %v872
    %v887 = vpack.c.b16 %v875, %v874
    %v888 = vpack.c.b16 %v877, %v876
    %v889 = vpack.c.b16 %v879, %v878
    %v890 = vpack.c.b16 %v881, %v880
    %v891 = vpack.c.b16 %v883, %v882
    %900 = vmatprep.subr.bf16.mxu0 0
    %901 = vmatpush1.bf16.msra.mxu0 %v884
    %902 = vmatprep.subr.bf16.mxu0 0
    %903 = vmatpush1.bf16.msra.mxu0 %v885
    %904 = vmatprep.subr.bf16.mxu0 0
    %905 = vmatpush1.bf16.msra.mxu0 %v886
    %906 = vmatprep.subr.bf16.mxu0 0
    %907 = vmatpush1.bf16.msra.mxu0 %v887
    %908 = vmatprep.subr.bf16.mxu0 0
    %909 = vmatpush1.bf16.msra.mxu0 %v888
    %910 = vmatprep.subr.bf16.mxu0 0
    %911 = vmatpush1.bf16.msra.mxu0 %v889
    %912 = vmatprep.subr.bf16.mxu0 0
    %913 = vmatpush1.bf16.msra.mxu0 %v890
    %914 = vmatprep.subr.bf16.mxu0 0
    %915 = vmatpush1.bf16.msra.mxu0 %v891
    %916 = vmatprep.subr.bf16.mxu0 0
    %917 = vmatpush1.bf16.msra.mxu0 0
    %918 = vmatprep.subr.bf16.mxu0 0
    %919 = vmatpush1.bf16.msra.mxu0 0
    %920 = vmatprep.subr.bf16.mxu0 0
    %921 = vmatpush1.bf16.msra.mxu0 0
    %922 = vmatprep.subr.bf16.mxu0 0
    %923 = vmatpush1.bf16.msra.mxu0 0
    %924 = vmatprep.subr.bf16.mxu0 0
    %925 = vmatpush1.bf16.msra.mxu0 0
    %926 = vmatprep.subr.bf16.mxu0 0
    %927 = vmatpush1.bf16.msra.mxu0 0
    %928 = vmatprep.subr.bf16.mxu0 0
    %929 = vmatpush1.bf16.msra.mxu0 0
    %930 = vmatprep.subr.bf16.mxu0 0
    %931 = vmatpush1.bf16.msra.mxu0 0
    %932 = vmatprep.mubr.bf16.mxu0 0
    %933 = vmatmul.mubr.bf16.gmra.mrb[0].mxu0 %v826
    %v934 = vpop.f32.mrb[0].mxu0
    %v935 = vadd.f32 %v850, %v934
    %v936 = vpop.f32.mrb[0].mxu0
    %v937 = vpop.f32.mrb[0].mxu0
    %v938 = vadd.f32 %v850, %v937
    %v939 = vpop.f32.mrb[0].mxu0
    %940 = vdwg.mxu0
    %vm941 = vcmp.ge.f32.partialorder %v935, 0.0
    %vm942 = vcmp.ge.f32.partialorder %v938, 0.0
    %v943 = vmul.f32 %v935, 1.4142135
    %v944 = vmul.f32 %v938, 1.4142135
    %v945 = vmul.f32 %v935, 0.28284273
    %v946 = vmul.f32 %v938, 0.28284273
    %v947 = vsel %vm941, %v943, %v945
    %v948 = vsel %vm942, %v944, %v946
    %v949 = vpack.c.bf16 %v948, %v947
    %s950 = scalar_lea.vmem [#allocation7], 192
    %v951 = vld [vmem:[%s950] sm:$0xf]
    %v952 = vld [vmem:[%s950 + $0x4] sm:$0xf]
    %v953 = vld [vmem:[%s950 + $0x8] sm:$0xf]
    %v954 = vld [vmem:[%s950 + $0xc] sm:$0xf]
    %v955 = vld [vmem:[%s950 + $0x10] sm:$0xf]
    %v956 = vld [vmem:[%s950 + $0x14] sm:$0xf]
    %v957 = vld [vmem:[%s950 + $0x18] sm:$0xf]
    %v958 = vld [vmem:[%s950 + $0x1c] sm:$0xf]
    %v959 = vld [vmem:[%s950 + $0x20] sm:$0xf]
    %v960 = vld [vmem:[%s950 + $0x24] sm:$0xf]
    %v961 = vld [vmem:[%s950 + $0x28] sm:$0xf]
    %v962 = vld [vmem:[%s950 + $0x2c] sm:$0xf]
    %v963 = vld [vmem:[%s950 + $0x30] sm:$0xf]
    %v964 = vld [vmem:[%s950 + $0x34] sm:$0xf]
    %v965 = vld [vmem:[%s950 + $0x38] sm:$0xf]
    %v966 = vld [vmem:[%s950 + $0x3c] sm:$0xf]
    %s967 = scalar_lea.vmem %s6, 3
    %v968 = vld [vmem:[%s967] sm:$0x1]
    %v970 = vlaneseq
    %v971 = vshrl.u32 %v970, 7
    %v972 = vsub.s32 0, %v971
    %v973 = vrot.slane %v968, %v972
    %v991 = vunpack.c.l.b16 %v951
    %v992 = vunpack.c.l.b16 %v952
    %v993 = vunpack.c.l.b16 %v953
    %v994 = vunpack.c.l.b16 %v954
    %v995 = vunpack.c.l.b16 %v955
    %v996 = vunpack.c.l.b16 %v956
    %v997 = vunpack.c.l.b16 %v957
    %v998 = vunpack.c.l.b16 %v958
    %v999 = vunpack.c.l.b16 %v959
    %v1000 = vunpack.c.l.b16 %v960
    %v1001 = vunpack.c.l.b16 %v961
    %v1002 = vunpack.c.l.b16 %v962
    %v1003 = vunpack.c.l.b16 %v963
    %v1004 = vunpack.c.l.b16 %v964
    %v1005 = vunpack.c.l.b16 %v965
    %v1006 = vunpack.c.l.b16 %v966
    %v1007 = vpack.c.b16 %v992, %v991
    %v1008 = vpack.c.b16 %v994, %v993
    %v1009 = vpack.c.b16 %v996, %v995
    %v1010 = vpack.c.b16 %v998, %v997
    %v1011 = vpack.c.b16 %v1000, %v999
    %v1012 = vpack.c.b16 %v1002, %v1001
    %v1013 = vpack.c.b16 %v1004, %v1003
    %v1014 = vpack.c.b16 %v1006, %v1005
    %1023 = vmatprep.subr.bf16.mxu0 0
    %1024 = vmatpush1.bf16.msra.mxu0 %v1007
    %1025 = vmatprep.subr.bf16.mxu0 0
    %1026 = vmatpush1.bf16.msra.mxu0 %v1008
    %1027 = vmatprep.subr.bf16.mxu0 0
    %1028 = vmatpush1.bf16.msra.mxu0 %v1009
    %1029 = vmatprep.subr.bf16.mxu0 0
    %1030 = vmatpush1.bf16.msra.mxu0 %v1010
    %1031 = vmatprep.subr.bf16.mxu0 0
    %1032 = vmatpush1.bf16.msra.mxu0 %v1011
    %1033 = vmatprep.subr.bf16.mxu0 0
    %1034 = vmatpush1.bf16.msra.mxu0 %v1012
    %1035 = vmatprep.subr.bf16.mxu0 0
    %1036 = vmatpush1.bf16.msra.mxu0 %v1013
    %1037 = vmatprep.subr.bf16.mxu0 0
    %1038 = vmatpush1.bf16.msra.mxu0 %v1014
    %1039 = vmatprep.subr.bf16.mxu0 0
    %1040 = vmatpush1.bf16.msra.mxu0 0
    %1041 = vmatprep.subr.bf16.mxu0 0
    %1042 = vmatpush1.bf16.msra.mxu0 0
    %1043 = vmatprep.subr.bf16.mxu0 0
    %1044 = vmatpush1.bf16.msra.mxu0 0
    %1045 = vmatprep.subr.bf16.mxu0 0
    %1046 = vmatpush1.bf16.msra.mxu0 0
    %1047 = vmatprep.subr.bf16.mxu0 0
    %1048 = vmatpush1.bf16.msra.mxu0 0
    %1049 = vmatprep.subr.bf16.mxu0 0
    %1050 = vmatpush1.bf16.msra.mxu0 0
    %1051 = vmatprep.subr.bf16.mxu0 0
    %1052 = vmatpush1.bf16.msra.mxu0 0
    %1053 = vmatprep.subr.bf16.mxu0 0
    %1054 = vmatpush1.bf16.msra.mxu0 0
    %1055 = vmatprep.mubr.bf16.mxu0 0
    %1056 = vmatmul.mubr.bf16.gmra.mrb[0].mxu0 %v949
    %v1057 = vpop.f32.mrb[0].mxu0
    %v1058 = vadd.f32 %v973, %v1057
    %v1059 = vpop.f32.mrb[0].mxu0
    %v1060 = vpop.f32.mrb[0].mxu0
    %v1061 = vadd.f32 %v973, %v1060
    %v1062 = vpop.f32.mrb[0].mxu0
    %1063 = vdwg.mxu0
    %vm1064 = vcmp.ge.f32.partialorder %v1058, 0.0
    %vm1065 = vcmp.ge.f32.partialorder %v1061, 0.0
    %v1066 = vmul.f32 %v1058, 1.4142135
    %v1067 = vmul.f32 %v1061, 1.4142135
    %v1068 = vmul.f32 %v1058, 0.28284273
    %v1069 = vmul.f32 %v1061, 0.28284273
    %v1070 = vsel %vm1064, %v1066, %v1068
    %v1071 = vsel %vm1065, %v1067, %v1069
    %v1072 = vadd.f32 %v67, %v1070
    %v1073 = vadd.f32 %v68, %v1071
    %1074 = vst [vmem:[#allocation8] sm:$0xff] %v1072
    %1075 = vst [vmem:[#allocation8 + $0x8] sm:$0xff] %v1073
    // Predicated region
    $region42: #{tpu_custom_call.1} parent=1 // pred_check
      _
    $region43: #{tpu_custom_call.1} parent=1 // pred_check_branch
      %1077 = sbr.rel (0) target = $region45
    $region44: #{tpu_custom_call.1} parent=1 // pred_region
      %s1079 = ssub.s32 256, 256
      %1080 = vsyncadd [#allocation4], %s1079
      %s1081 = sshll.u32 [#allocation8], 4
      %s1082 = int_to_ptr.vmem [resolvable:$true] %s1081
      %1087 = dma.vmem_to_hbm [thread:$0]  %s1082, 256, %s7, [#allocation4], 128, 128, 8
    $region45: #{tpu_custom_call.1} parent=1 // pred_fallthru
      _
    // Predicated region
    $region46: #{tpu_custom_call.1} parent=1 // pred_check
      _
    $region47: #{tpu_custom_call.1} parent=1 // pred_check_branch
      %1089 = sbr.rel (0) target = $region49
    $region48: #{tpu_custom_call.1} parent=1 // pred_region
      %1090 = dma.done [#allocation4], 256
    $region49: #{tpu_custom_call.1} parent=1 // pred_fallthru
      _
    %1091 = vsyncpa [#allocation3], 1
    %1092 = vsyncpa [#allocation6], 1
    %1093 = vsyncpa [#allocation4], 1

</llo_original>
